<compile_context>
chip_gen: v7x
topology: tpu7x:2x2x1
jax: 0.10.0
libtpu: 0.0.40
codegen_flags: <defaults>
</compile_context>

<pallas_src>
import functools

import jax
import jax.numpy as jnp
from jax import lax
from jax.experimental import pallas as pl
from jax.experimental.pallas import tpu as pltpu

_LANE = 128                         # gate slabs padded to a multiple of this
_SUB = 16                           # sublane packing for bf16 (covers f32's 8)
_VMEM_BUDGET = 48 * 1024 * 1024     # block sizing budget (v7x 64 MiB is binding)
_VMEM_LIMIT = 56 * 1024 * 1024      # explicit cap: > v5e's 16 MiB scoped default,
                                    # < v7x's 64 MiB physical VMEM


def _round_up(x, m):
    return (x + m - 1) // m * m


def _pad_gate_rows(a, H, H_pad):
    """Pad the leading 4H gate axis to 4*H_pad keeping PyTorch's [i,f,g,o]
    gate blocks, so each gate occupies a lane-aligned H_pad-wide slab."""
    if H_pad == H:
        return a
    a4 = a.reshape((4, H) + a.shape[1:])
    pad = [(0, 0), (0, H_pad - H)] + [(0, 0)] * (a.ndim - 1)
    return jnp.pad(a4, pad).reshape((4 * H_pad,) + a.shape[1:])


def _pick_block_t(T, B_blk, H_pad, gate_bytes):
    """Largest time block whose double-buffered pipeline fits the VMEM budget."""
    fixed = (H_pad * 4 * H_pad * 4          # single-buffered W_hh^T scratch (f32)
             + 2 * B_blk * H_pad * 4        # h / c state scratch (f32)
             + 2 * B_blk * H_pad * 4)       # double-buffered output block (f32)
    per_t = 2 * B_blk * 4 * H_pad * gate_bytes   # double-buffered gates_x slab
    tt = (_VMEM_BUDGET - fixed) // per_t
    return int(max(1, min(tt, T, 512)))


def lstm_recurrence_kernel(gx_ref, w_hh_hbm, h_out_ref,
                           w_hh_vmem, h_scr, c_scr,
                           *, block_t, seq_len, needs_mask, unroll):
    """Serial LSTM recurrence over one (batch block, time block) grid cell.

    gx_ref:    (block_t, B_blk, 4*H_pad)  precomputed x-projection + bias
    w_hh_hbm:  (H_pad, 4*H_pad)           recurrent weight in HBM (pl.ANY)
    h_out_ref: (B_blk, H_pad)             final hidden state (last step only)
    w_hh_vmem: (H_pad, 4*H_pad)           resident single-buffered weight copy
    h_scr, c_scr: (B_blk, H_pad)          persistent hidden / cell state
    """
    t_blk = pl.program_id(1)
    H = h_scr.shape[1]                      # = H_pad, multiple of 128

    @pl.when(t_blk == 0)
    def _():
        # New batch block: load W_hh^T once into its single-buffered scratch
        # and reset the recurrent state.
        pltpu.sync_copy(w_hh_hbm, w_hh_vmem)
        h_scr[...] = jnp.zeros_like(h_scr)
        c_scr[...] = jnp.zeros_like(c_scr)

    # Hoist the recurrent weight load out of the time loop.
    w_hh = w_hh_vmem[...]                   # (H_pad, 4*H_pad), f32

    def step(i, carry):
        h, c = carry
        # PyTorch gate order [i, f, g, o]; bias already folded into gx_ref.
        # gx is streamed in bf16 but the gate math is done in f32.
        gates = (gx_ref[i].astype(jnp.float32)
                 + jnp.dot(h, w_hh, preferred_element_type=jnp.float32))
        i_g = jax.nn.sigmoid(gates[:, 0 * H:1 * H])
        f_g = jax.nn.sigmoid(gates[:, 1 * H:2 * H])
        g_g = jnp.tanh(gates[:, 2 * H:3 * H])
        o_g = jax.nn.sigmoid(gates[:, 3 * H:4 * H])
        c_new = f_g * c + i_g * g_g
        h_new = o_g * jnp.tanh(c_new)
        if needs_mask:
            # Only when T was padded up to a multiple of block_t: padded
            # trailing steps must not advance the state.
            valid = (t_blk * block_t + i) < seq_len
            h_new = jnp.where(valid, h_new, h)
            c_new = jnp.where(valid, c_new, c)
        return h_new, c_new

    h, c = lax.fori_loop(0, block_t, step, (h_scr[...], c_scr[...]),
                         unroll=unroll)
    h_scr[...] = h
    c_scr[...] = c

    @pl.when(t_blk == pl.num_programs(1) - 1)
    def _():
        h_out_ref[...] = h.astype(h_out_ref.dtype)


@functools.partial(jax.jit, static_argnames=("gates_dtype",))
def lstm_forward(x, w_ih, w_hh, b_ih, b_hh, w_fc, b_fc, *,
                 gates_dtype=jnp.bfloat16):
    """x: (B, T, I) batch_first, like the PyTorch module.  Returns (B, O)."""
    B, T, I = x.shape
    H = w_hh.shape[1]
    H_pad = _round_up(H, _LANE)
    B_pad = _round_up(B, _SUB)
    # At most two batch blocks: the leading "parallel" grid axis lets v7x's
    # two TensorCores each take one; on single-TC chips the extra block is
    # just one more cheap grid step.
    n_b = 2 if (B_pad % (2 * _SUB) == 0) else 1
    B_blk = B_pad // n_b

    hi = jax.lax.Precision.HIGHEST

    # Gate-blocked padding so each gate slab is lane aligned (H_pad % 128 == 0)
    # and the recurrent matmul K dim is MXU friendly.
    w_ih_p = _pad_gate_rows(w_ih, H, H_pad)                    # (4Hp, I)
    b_p = _pad_gate_rows(b_ih + b_hh, H, H_pad)                # (4Hp,)
    w_hh_p = _pad_gate_rows(w_hh, H, H_pad)                    # (4Hp, H)
    if H_pad != H:
        w_hh_p = jnp.pad(w_hh_p, ((0, 0), (0, H_pad - H)))     # (4Hp, Hp)
    w_hh_t = w_hh_p.T.astype(jnp.float32)                      # (Hp, 4Hp)

    # ---- Phase 1 (parallel, plain XLA): one big input projection emitted
    # directly in (T, B, 4Hp) order (no HBM transpose of the big activation),
    # bias folded in, streamed as `gates_dtype` (bf16 halves HBM traffic).
    gates_x = jnp.einsum("bti,gi->tbg", x, w_ih_p, precision=hi) + b_p
    gates_x = gates_x.astype(gates_dtype)

    gate_bytes = jnp.dtype(gates_dtype).itemsize
    TT = _pick_block_t(T, B_blk, H_pad, gate_bytes)
    T_pad = pl.cdiv(T, TT) * TT
    gates_x = jnp.pad(gates_x, ((0, T_pad - T), (0, B_pad - B), (0, 0)))

    kernel = functools.partial(
        lstm_recurrence_kernel,
        block_t=TT, seq_len=T, needs_mask=(T_pad != T),
        unroll=min(8, TT))

    # ---- Phase 2 (Pallas): the serial recurrence only.
    # TODO(synk): for very small batches, keeping W_hh resident in the MXU via
    # pltpu.matmul_push_rhs/matmul_acc_lhs would amortize weight streaming.
    h_last = pl.pallas_call(
        kernel,
        out_shape=jax.ShapeDtypeStruct((B_pad, H_pad), jnp.float32),
        grid_spec=pltpu.PrefetchScalarGridSpec(
            num_scalar_prefetch=0,
            grid=(B_pad // B_blk, T_pad // TT),
            in_specs=[
                pl.BlockSpec((TT, B_blk, 4 * H_pad),
                             lambda b, t: (t, b, 0)),          # gates_x
                pl.BlockSpec(memory_space=pl.ANY),             # W_hh^T (HBM)
            ],
            out_specs=pl.BlockSpec((B_blk, H_pad), lambda b, t: (b, 0)),
            scratch_shapes=[
                pltpu.VMEM((H_pad, 4 * H_pad), jnp.float32),   # resident W_hh^T
                pltpu.VMEM((B_blk, H_pad), jnp.float32),       # h state
                pltpu.VMEM((B_blk, H_pad), jnp.float32),       # c state
            ],
        ),
        compiler_params=pltpu.CompilerParams(
            dimension_semantics=("parallel", "arbitrary"),
            vmem_limit_bytes=_VMEM_LIMIT),
    )(gates_x, w_hh_t)

    # ---- Phase 3 (plain XLA): final Linear on the last hidden state only
    # (== fc(output[:, -1, :])).  Drop padded batch rows and hidden columns.
    return jnp.dot(h_last[:B, :H], w_fc.T, precision=hi) + b_fc


def reference_forward(x, w_ih, w_hh, b_ih, b_hh, w_fc, b_fc):
    """Pure-JAX reference mirroring torch.nn.LSTM(batch_first=True) + Linear."""
    B, T, _ = x.shape
    H = w_hh.shape[1]
    hi = jax.lax.Precision.HIGHEST
    h = jnp.zeros((B, H), jnp.float32)
    c = jnp.zeros((B, H), jnp.float32)
    for t in range(T):
        gates = (jnp.dot(x[:, t, :], w_ih.T, precision=hi)
                 + jnp.dot(h, w_hh.T, precision=hi) + b_ih + b_hh)
        i_g = jax.nn.sigmoid(gates[:, 0 * H:1 * H])
        f_g = jax.nn.sigmoid(gates[:, 1 * H:2 * H])
        g_g = jnp.tanh(gates[:, 2 * H:3 * H])
        o_g = jax.nn.sigmoid(gates[:, 3 * H:4 * H])
        c = f_g * c + i_g * g_g
        h = o_g * jnp.tanh(c)
    return jnp.dot(h, w_fc.T, precision=hi) + b_fc


if __name__ == "__main__":
    B, T, I, H, O = 2, 8, 16, 32, 8

    key = jax.random.PRNGKey(0)
    ks = jax.random.split(key, 7)
    bound = 1.0 / (H ** 0.5)
    # PyTorch-shaped params, uniform(-1/sqrt(H), 1/sqrt(H)) like nn.LSTM/Linear.
    w_ih = jax.random.uniform(ks[0], (4 * H, I), jnp.float32, -bound, bound)
    w_hh = jax.random.uniform(ks[1], (4 * H, H), jnp.float32, -bound, bound)
    b_ih = jax.random.uniform(ks[2], (4 * H,), jnp.float32, -bound, bound)
    b_hh = jax.random.uniform(ks[3], (4 * H,), jnp.float32, -bound, bound)
    w_fc = jax.random.uniform(ks[4], (O, H), jnp.float32, -bound, bound)
    b_fc = jax.random.uniform(ks[5], (O,), jnp.float32, -bound, bound)

    x = jax.random.normal(ks[6], (B, T, I), jnp.float32)

    ref = reference_forward(x, w_ih, w_hh, b_ih, b_hh, w_fc, b_fc)

    # f32-streamed gates: fp32 parity with the PyTorch module.
    out_f32 = jax.block_until_ready(
        lstm_forward(x, w_ih, w_hh, b_ih, b_hh, w_fc, b_fc,
                     gates_dtype=jnp.float32))
    assert out_f32.shape == (B, O)
    assert jnp.allclose(out_f32, ref, atol=5e-5, rtol=5e-5), (out_f32, ref)

    # bf16-streamed gates (default fast path): only the gate pre-activations
    # are rounded to bf16; state / accumulation stay f32.
    out_bf16 = jax.block_until_ready(
        lstm_forward(x, w_ih, w_hh, b_ih, b_hh, w_fc, b_fc))
    assert out_bf16.shape == (B, O)
    assert jnp.allclose(out_bf16, ref, atol=3e-2, rtol=3e-2), (out_bf16, ref)

    print("KERNEL_OK")
</pallas_src>

<mosaic_0001>
module attributes {stable_mosaic.version = 11 : i64} {
  func.func @lstm_recurrence_kernel(%arg0: i32, %arg1: i32, %arg2: memref<8x16x512xf32, #tpu.memory_space<vmem>>, %arg3: memref<128x512xf32, #tpu.memory_space<any>>, %arg4: memref<16x128xf32, #tpu.memory_space<vmem>>, %arg5: memref<128x512xf32, #tpu.memory_space<vmem>>, %arg6: memref<16x128xf32, #tpu.memory_space<vmem>>, %arg7: memref<16x128xf32, #tpu.memory_space<vmem>>) attributes {dimension_semantics = [#tpu.dimension_semantics<parallel>, #tpu.dimension_semantics<arbitrary>], iteration_bounds = array<i64: 1, 1>, scalar_prefetch = 0 : i64, scratch_operands = 3 : i64, tpu.core_type = #tpu.core_type<tc>, window_params = [{transform_indices = @transform_0, window_bounds = array<i64: 8, 16, 512>}, {}, {transform_indices = @transform_2, window_bounds = array<i64: 16, 128>}]} {
    %c0_i32 = arith.constant 0 : i32
    %0 = arith.cmpi eq, %arg1, %c0_i32 : i32
    %1 = arith.extui %0 : i1 to i32
    %c0_i32_0 = arith.constant 0 : i32
    %2 = arith.cmpi ne, %1, %c0_i32_0 : i32
    scf.if %2 {
      "tpu.region"() ({
        %255 = tpu.sem_alloc : memref<!tpu.dma_semaphore, #tpu.memory_space<semaphore_mem>>
        tpu.enqueue_dma source(%arg3 : memref<128x512xf32, #tpu.memory_space<any>>) target(%arg5 : memref<128x512xf32, #tpu.memory_space<vmem>>) target_semaphore(%255 : memref<!tpu.dma_semaphore, #tpu.memory_space<semaphore_mem>>)
        tpu.wait_dma2 semaphore(%255 : memref<!tpu.dma_semaphore, #tpu.memory_space<semaphore_mem>>) src(%arg3 : memref<128x512xf32, #tpu.memory_space<any>>) dst(%arg5 : memref<128x512xf32, #tpu.memory_space<vmem>>)
        tpu.yield
      }) : () -> ()
      %cst_60 = arith.constant 0.000000e+00 : f32
      %251 = vector.broadcast %cst_60 : f32 to vector<16x128xf32>
      %c0_61 = arith.constant 0 : index
      %c0_62 = arith.constant 0 : index
      %252 = vector.load %arg6[%c0_61, %c0_62] : memref<16x128xf32, #tpu.memory_space<vmem>>, vector<16x128xf32>
      tpu.vector_store %arg6[%c0_61, %c0_62], %251 {strides = array<i32>} : memref<16x128xf32, #tpu.memory_space<vmem>>, vector<16x128xf32>,
      %cst_63 = arith.constant 0.000000e+00 : f32
      %253 = vector.broadcast %cst_63 : f32 to vector<16x128xf32>
      %c0_64 = arith.constant 0 : index
      %c0_65 = arith.constant 0 : index
      %254 = vector.load %arg7[%c0_64, %c0_65] : memref<16x128xf32, #tpu.memory_space<vmem>>, vector<16x128xf32>
      tpu.vector_store %arg7[%c0_64, %c0_65], %253 {strides = array<i32>} : memref<16x128xf32, #tpu.memory_space<vmem>>, vector<16x128xf32>,
    } else {
    }
    %c0 = arith.constant 0 : index
    %c0_1 = arith.constant 0 : index
    %3 = vector.load %arg5[%c0, %c0_1] : memref<128x512xf32, #tpu.memory_space<vmem>>, vector<128x512xf32>
    %c0_2 = arith.constant 0 : index
    %c0_3 = arith.constant 0 : index
    %4 = vector.load %arg6[%c0_2, %c0_3] : memref<16x128xf32, #tpu.memory_space<vmem>>, vector<16x128xf32>
    %c0_4 = arith.constant 0 : index
    %c0_5 = arith.constant 0 : index
    %5 = vector.load %arg7[%c0_4, %c0_5] : memref<16x128xf32, #tpu.memory_space<vmem>>, vector<16x128xf32>
    %c0_i32_6 = arith.constant 0 : i32
    %6 = arith.index_cast %c0_i32_6 : i32 to index
    %c0_7 = arith.constant 0 : index
    %c0_8 = arith.constant 0 : index
    %7 = vector.load %arg2[%6, %c0_7, %c0_8] : memref<8x16x512xf32, #tpu.memory_space<vmem>>, vector<1x16x512xf32>
    %8 = vector.shape_cast %7 : vector<1x16x512xf32> to vector<16x512xf32>
    %cst = arith.constant dense<0.000000e+00> : vector<16x512xf32>
    %9 = tpu.matmul %4, %3, %cst {dimension_numbers = #tpu.dot_dimension_numbers<[1], [0], [0], [1], [0, 0, 1, 1], [], []>} : vector<16x128xf32>, vector<128x512xf32>, vector<16x512xf32> -> vector<16x512xf32>
    %10 = arith.addf %8, %9 : vector<16x512xf32>
    %11 = vector.extract_strided_slice %10 {offsets = [0, 0], sizes = [16, 128], strides = [1, 1]} : vector<16x512xf32> to vector<16x128xf32>
    %12 = arith.negf %11 : vector<16x128xf32>
    %13 = math.exp %12 : vector<16x128xf32>
    %cst_9 = arith.constant 1.000000e+00 : f32
    %14 = vector.broadcast %cst_9 : f32 to vector<16x128xf32>
    %15 = arith.addf %14, %13 : vector<16x128xf32>
    %16 = arith.divf %14, %15 : vector<16x128xf32>
    %17 = vector.extract_strided_slice %10 {offsets = [0, 128], sizes = [16, 128], strides = [1, 1]} : vector<16x512xf32> to vector<16x128xf32>
    %18 = arith.negf %17 : vector<16x128xf32>
    %19 = math.exp %18 : vector<16x128xf32>
    %cst_10 = arith.constant 1.000000e+00 : f32
    %20 = vector.broadcast %cst_10 : f32 to vector<16x128xf32>
    %21 = arith.addf %20, %19 : vector<16x128xf32>
    %22 = arith.divf %20, %21 : vector<16x128xf32>
    %23 = vector.extract_strided_slice %10 {offsets = [0, 256], sizes = [16, 128], strides = [1, 1]} : vector<16x512xf32> to vector<16x128xf32>
    %24 = math.tanh %23 : vector<16x128xf32>
    %25 = vector.extract_strided_slice %10 {offsets = [0, 384], sizes = [16, 128], strides = [1, 1]} : vector<16x512xf32> to vector<16x128xf32>
    %26 = arith.negf %25 : vector<16x128xf32>
    %27 = math.exp %26 : vector<16x128xf32>
    %cst_11 = arith.constant 1.000000e+00 : f32
    %28 = vector.broadcast %cst_11 : f32 to vector<16x128xf32>
    %29 = arith.addf %28, %27 : vector<16x128xf32>
    %30 = arith.divf %28, %29 : vector<16x128xf32>
    %31 = arith.mulf %22, %5 : vector<16x128xf32>
    %32 = arith.mulf %16, %24 : vector<16x128xf32>
    %33 = arith.addf %31, %32 : vector<16x128xf32>
    %34 = math.tanh %33 : vector<16x128xf32>
    %35 = arith.mulf %30, %34 : vector<16x128xf32>
    %c1_i32 = arith.constant 1 : i32
    %36 = arith.index_cast %c1_i32 : i32 to index
    %c0_12 = arith.constant 0 : index
    %c0_13 = arith.constant 0 : index
    %37 = vector.load %arg2[%36, %c0_12, %c0_13] : memref<8x16x512xf32, #tpu.memory_space<vmem>>, vector<1x16x512xf32>
    %38 = vector.shape_cast %37 : vector<1x16x512xf32> to vector<16x512xf32>
    %cst_14 = arith.constant dense<0.000000e+00> : vector<16x512xf32>
    %39 = tpu.matmul %35, %3, %cst_14 {dimension_numbers = #tpu.dot_dimension_numbers<[1], [0], [0], [1], [0, 0, 1, 1], [], []>} : vector<16x128xf32>, vector<128x512xf32>, vector<16x512xf32> -> vector<16x512xf32>
    %40 = arith.addf %38, %39 : vector<16x512xf32>
    %41 = vector.extract_strided_slice %40 {offsets = [0, 0], sizes = [16, 128], strides = [1, 1]} : vector<16x512xf32> to vector<16x128xf32>
    %42 = arith.negf %41 : vector<16x128xf32>
    %43 = math.exp %42 : vector<16x128xf32>
    %cst_15 = arith.constant 1.000000e+00 : f32
    %44 = vector.broadcast %cst_15 : f32 to vector<16x128xf32>
    %45 = arith.addf %44, %43 : vector<16x128xf32>
    %46 = arith.divf %44, %45 : vector<16x128xf32>
    %47 = vector.extract_strided_slice %40 {offsets = [0, 128], sizes = [16, 128], strides = [1, 1]} : vector<16x512xf32> to vector<16x128xf32>
    %48 = arith.negf %47 : vector<16x128xf32>
    %49 = math.exp %48 : vector<16x128xf32>
    %cst_16 = arith.constant 1.000000e+00 : f32
    %50 = vector.broadcast %cst_16 : f32 to vector<16x128xf32>
    %51 = arith.addf %50, %49 : vector<16x128xf32>
    %52 = arith.divf %50, %51 : vector<16x128xf32>
    %53 = vector.extract_strided_slice %40 {offsets = [0, 256], sizes = [16, 128], strides = [1, 1]} : vector<16x512xf32> to vector<16x128xf32>
    %54 = math.tanh %53 : vector<16x128xf32>
    %55 = vector.extract_strided_slice %40 {offsets = [0, 384], sizes = [16, 128], strides = [1, 1]} : vector<16x512xf32> to vector<16x128xf32>
    %56 = arith.negf %55 : vector<16x128xf32>
    %57 = math.exp %56 : vector<16x128xf32>
    %cst_17 = arith.constant 1.000000e+00 : f32
    %58 = vector.broadcast %cst_17 : f32 to vector<16x128xf32>
    %59 = arith.addf %58, %57 : vector<16x128xf32>
    %60 = arith.divf %58, %59 : vector<16x128xf32>
    %61 = arith.mulf %52, %33 : vector<16x128xf32>
    %62 = arith.mulf %46, %54 : vector<16x128xf32>
    %63 = arith.addf %61, %62 : vector<16x128xf32>
    %64 = math.tanh %63 : vector<16x128xf32>
    %65 = arith.mulf %60, %64 : vector<16x128xf32>
    %c2_i32 = arith.constant 2 : i32
    %66 = arith.index_cast %c2_i32 : i32 to index
    %c0_18 = arith.constant 0 : index
    %c0_19 = arith.constant 0 : index
    %67 = vector.load %arg2[%66, %c0_18, %c0_19] : memref<8x16x512xf32, #tpu.memory_space<vmem>>, vector<1x16x512xf32>
    %68 = vector.shape_cast %67 : vector<1x16x512xf32> to vector<16x512xf32>
    %cst_20 = arith.constant dense<0.000000e+00> : vector<16x512xf32>
    %69 = tpu.matmul %65, %3, %cst_20 {dimension_numbers = #tpu.dot_dimension_numbers<[1], [0], [0], [1], [0, 0, 1, 1], [], []>} : vector<16x128xf32>, vector<128x512xf32>, vector<16x512xf32> -> vector<16x512xf32>
    %70 = arith.addf %68, %69 : vector<16x512xf32>
    %71 = vector.extract_strided_slice %70 {offsets = [0, 0], sizes = [16, 128], strides = [1, 1]} : vector<16x512xf32> to vector<16x128xf32>
    %72 = arith.negf %71 : vector<16x128xf32>
    %73 = math.exp %72 : vector<16x128xf32>
    %cst_21 = arith.constant 1.000000e+00 : f32
    %74 = vector.broadcast %cst_21 : f32 to vector<16x128xf32>
    %75 = arith.addf %74, %73 : vector<16x128xf32>
    %76 = arith.divf %74, %75 : vector<16x128xf32>
    %77 = vector.extract_strided_slice %70 {offsets = [0, 128], sizes = [16, 128], strides = [1, 1]} : vector<16x512xf32> to vector<16x128xf32>
    %78 = arith.negf %77 : vector<16x128xf32>
    %79 = math.exp %78 : vector<16x128xf32>
    %cst_22 = arith.constant 1.000000e+00 : f32
    %80 = vector.broadcast %cst_22 : f32 to vector<16x128xf32>
    %81 = arith.addf %80, %79 : vector<16x128xf32>
    %82 = arith.divf %80, %81 : vector<16x128xf32>
    %83 = vector.extract_strided_slice %70 {offsets = [0, 256], sizes = [16, 128], strides = [1, 1]} : vector<16x512xf32> to vector<16x128xf32>
    %84 = math.tanh %83 : vector<16x128xf32>
    %85 = vector.extract_strided_slice %70 {offsets = [0, 384], sizes = [16, 128], strides = [1, 1]} : vector<16x512xf32> to vector<16x128xf32>
    %86 = arith.negf %85 : vector<16x128xf32>
    %87 = math.exp %86 : vector<16x128xf32>
    %cst_23 = arith.constant 1.000000e+00 : f32
    %88 = vector.broadcast %cst_23 : f32 to vector<16x128xf32>
    %89 = arith.addf %88, %87 : vector<16x128xf32>
    %90 = arith.divf %88, %89 : vector<16x128xf32>
    %91 = arith.mulf %82, %63 : vector<16x128xf32>
    %92 = arith.mulf %76, %84 : vector<16x128xf32>
    %93 = arith.addf %91, %92 : vector<16x128xf32>
    %94 = math.tanh %93 : vector<16x128xf32>
    %95 = arith.mulf %90, %94 : vector<16x128xf32>
    %c3_i32 = arith.constant 3 : i32
    %96 = arith.index_cast %c3_i32 : i32 to index
    %c0_24 = arith.constant 0 : index
    %c0_25 = arith.constant 0 : index
    %97 = vector.load %arg2[%96, %c0_24, %c0_25] : memref<8x16x512xf32, #tpu.memory_space<vmem>>, vector<1x16x512xf32>
    %98 = vector.shape_cast %97 : vector<1x16x512xf32> to vector<16x512xf32>
    %cst_26 = arith.constant dense<0.000000e+00> : vector<16x512xf32>
    %99 = tpu.matmul %95, %3, %cst_26 {dimension_numbers = #tpu.dot_dimension_numbers<[1], [0], [0], [1], [0, 0, 1, 1], [], []>} : vector<16x128xf32>, vector<128x512xf32>, vector<16x512xf32> -> vector<16x512xf32>
    %100 = arith.addf %98, %99 : vector<16x512xf32>
    %101 = vector.extract_strided_slice %100 {offsets = [0, 0], sizes = [16, 128], strides = [1, 1]} : vector<16x512xf32> to vector<16x128xf32>
    %102 = arith.negf %101 : vector<16x128xf32>
    %103 = math.exp %102 : vector<16x128xf32>
    %cst_27 = arith.constant 1.000000e+00 : f32
    %104 = vector.broadcast %cst_27 : f32 to vector<16x128xf32>
    %105 = arith.addf %104, %103 : vector<16x128xf32>
    %106 = arith.divf %104, %105 : vector<16x128xf32>
    %107 = vector.extract_strided_slice %100 {offsets = [0, 128], sizes = [16, 128], strides = [1, 1]} : vector<16x512xf32> to vector<16x128xf32>
    %108 = arith.negf %107 : vector<16x128xf32>
    %109 = math.exp %108 : vector<16x128xf32>
    %cst_28 = arith.constant 1.000000e+00 : f32
    %110 = vector.broadcast %cst_28 : f32 to vector<16x128xf32>
    %111 = arith.addf %110, %109 : vector<16x128xf32>
    %112 = arith.divf %110, %111 : vector<16x128xf32>
    %113 = vector.extract_strided_slice %100 {offsets = [0, 256], sizes = [16, 128], strides = [1, 1]} : vector<16x512xf32> to vector<16x128xf32>
    %114 = math.tanh %113 : vector<16x128xf32>
    %115 = vector.extract_strided_slice %100 {offsets = [0, 384], sizes = [16, 128], strides = [1, 1]} : vector<16x512xf32> to vector<16x128xf32>
    %116 = arith.negf %115 : vector<16x128xf32>
    %117 = math.exp %116 : vector<16x128xf32>
    %cst_29 = arith.constant 1.000000e+00 : f32
    %118 = vector.broadcast %cst_29 : f32 to vector<16x128xf32>
    %119 = arith.addf %118, %117 : vector<16x128xf32>
    %120 = arith.divf %118, %119 : vector<16x128xf32>
    %121 = arith.mulf %112, %93 : vector<16x128xf32>
    %122 = arith.mulf %106, %114 : vector<16x128xf32>
    %123 = arith.addf %121, %122 : vector<16x128xf32>
    %124 = math.tanh %123 : vector<16x128xf32>
    %125 = arith.mulf %120, %124 : vector<16x128xf32>
    %c4_i32 = arith.constant 4 : i32
    %126 = arith.index_cast %c4_i32 : i32 to index
    %c0_30 = arith.constant 0 : index
    %c0_31 = arith.constant 0 : index
    %127 = vector.load %arg2[%126, %c0_30, %c0_31] : memref<8x16x512xf32, #tpu.memory_space<vmem>>, vector<1x16x512xf32>
    %128 = vector.shape_cast %127 : vector<1x16x512xf32> to vector<16x512xf32>
    %cst_32 = arith.constant dense<0.000000e+00> : vector<16x512xf32>
    %129 = tpu.matmul %125, %3, %cst_32 {dimension_numbers = #tpu.dot_dimension_numbers<[1], [0], [0], [1], [0, 0, 1, 1], [], []>} : vector<16x128xf32>, vector<128x512xf32>, vector<16x512xf32> -> vector<16x512xf32>
    %130 = arith.addf %128, %129 : vector<16x512xf32>
    %131 = vector.extract_strided_slice %130 {offsets = [0, 0], sizes = [16, 128], strides = [1, 1]} : vector<16x512xf32> to vector<16x128xf32>
    %132 = arith.negf %131 : vector<16x128xf32>
    %133 = math.exp %132 : vector<16x128xf32>
    %cst_33 = arith.constant 1.000000e+00 : f32
    %134 = vector.broadcast %cst_33 : f32 to vector<16x128xf32>
    %135 = arith.addf %134, %133 : vector<16x128xf32>
    %136 = arith.divf %134, %135 : vector<16x128xf32>
    %137 = vector.extract_strided_slice %130 {offsets = [0, 128], sizes = [16, 128], strides = [1, 1]} : vector<16x512xf32> to vector<16x128xf32>
    %138 = arith.negf %137 : vector<16x128xf32>
    %139 = math.exp %138 : vector<16x128xf32>
    %cst_34 = arith.constant 1.000000e+00 : f32
    %140 = vector.broadcast %cst_34 : f32 to vector<16x128xf32>
    %141 = arith.addf %140, %139 : vector<16x128xf32>
    %142 = arith.divf %140, %141 : vector<16x128xf32>
    %143 = vector.extract_strided_slice %130 {offsets = [0, 256], sizes = [16, 128], strides = [1, 1]} : vector<16x512xf32> to vector<16x128xf32>
    %144 = math.tanh %143 : vector<16x128xf32>
    %145 = vector.extract_strided_slice %130 {offsets = [0, 384], sizes = [16, 128], strides = [1, 1]} : vector<16x512xf32> to vector<16x128xf32>
    %146 = arith.negf %145 : vector<16x128xf32>
    %147 = math.exp %146 : vector<16x128xf32>
    %cst_35 = arith.constant 1.000000e+00 : f32
    %148 = vector.broadcast %cst_35 : f32 to vector<16x128xf32>
    %149 = arith.addf %148, %147 : vector<16x128xf32>
    %150 = arith.divf %148, %149 : vector<16x128xf32>
    %151 = arith.mulf %142, %123 : vector<16x128xf32>
    %152 = arith.mulf %136, %144 : vector<16x128xf32>
    %153 = arith.addf %151, %152 : vector<16x128xf32>
    %154 = math.tanh %153 : vector<16x128xf32>
    %155 = arith.mulf %150, %154 : vector<16x128xf32>
    %c5_i32 = arith.constant 5 : i32
    %156 = arith.index_cast %c5_i32 : i32 to index
    %c0_36 = arith.constant 0 : index
    %c0_37 = arith.constant 0 : index
    %157 = vector.load %arg2[%156, %c0_36, %c0_37] : memref<8x16x512xf32, #tpu.memory_space<vmem>>, vector<1x16x512xf32>
    %158 = vector.shape_cast %157 : vector<1x16x512xf32> to vector<16x512xf32>
    %cst_38 = arith.constant dense<0.000000e+00> : vector<16x512xf32>
    %159 = tpu.matmul %155, %3, %cst_38 {dimension_numbers = #tpu.dot_dimension_numbers<[1], [0], [0], [1], [0, 0, 1, 1], [], []>} : vector<16x128xf32>, vector<128x512xf32>, vector<16x512xf32> -> vector<16x512xf32>
    %160 = arith.addf %158, %159 : vector<16x512xf32>
    %161 = vector.extract_strided_slice %160 {offsets = [0, 0], sizes = [16, 128], strides = [1, 1]} : vector<16x512xf32> to vector<16x128xf32>
    %162 = arith.negf %161 : vector<16x128xf32>
    %163 = math.exp %162 : vector<16x128xf32>
    %cst_39 = arith.constant 1.000000e+00 : f32
    %164 = vector.broadcast %cst_39 : f32 to vector<16x128xf32>
    %165 = arith.addf %164, %163 : vector<16x128xf32>
    %166 = arith.divf %164, %165 : vector<16x128xf32>
    %167 = vector.extract_strided_slice %160 {offsets = [0, 128], sizes = [16, 128], strides = [1, 1]} : vector<16x512xf32> to vector<16x128xf32>
    %168 = arith.negf %167 : vector<16x128xf32>
    %169 = math.exp %168 : vector<16x128xf32>
    %cst_40 = arith.constant 1.000000e+00 : f32
    %170 = vector.broadcast %cst_40 : f32 to vector<16x128xf32>
    %171 = arith.addf %170, %169 : vector<16x128xf32>
    %172 = arith.divf %170, %171 : vector<16x128xf32>
    %173 = vector.extract_strided_slice %160 {offsets = [0, 256], sizes = [16, 128], strides = [1, 1]} : vector<16x512xf32> to vector<16x128xf32>
    %174 = math.tanh %173 : vector<16x128xf32>
    %175 = vector.extract_strided_slice %160 {offsets = [0, 384], sizes = [16, 128], strides = [1, 1]} : vector<16x512xf32> to vector<16x128xf32>
    %176 = arith.negf %175 : vector<16x128xf32>
    %177 = math.exp %176 : vector<16x128xf32>
    %cst_41 = arith.constant 1.000000e+00 : f32
    %178 = vector.broadcast %cst_41 : f32 to vector<16x128xf32>
    %179 = arith.addf %178, %177 : vector<16x128xf32>
    %180 = arith.divf %178, %179 : vector<16x128xf32>
    %181 = arith.mulf %172, %153 : vector<16x128xf32>
    %182 = arith.mulf %166, %174 : vector<16x128xf32>
    %183 = arith.addf %181, %182 : vector<16x128xf32>
    %184 = math.tanh %183 : vector<16x128xf32>
    %185 = arith.mulf %180, %184 : vector<16x128xf32>
    %c6_i32 = arith.constant 6 : i32
    %186 = arith.index_cast %c6_i32 : i32 to index
    %c0_42 = arith.constant 0 : index
    %c0_43 = arith.constant 0 : index
    %187 = vector.load %arg2[%186, %c0_42, %c0_43] : memref<8x16x512xf32, #tpu.memory_space<vmem>>, vector<1x16x512xf32>
    %188 = vector.shape_cast %187 : vector<1x16x512xf32> to vector<16x512xf32>
    %cst_44 = arith.constant dense<0.000000e+00> : vector<16x512xf32>
    %189 = tpu.matmul %185, %3, %cst_44 {dimension_numbers = #tpu.dot_dimension_numbers<[1], [0], [0], [1], [0, 0, 1, 1], [], []>} : vector<16x128xf32>, vector<128x512xf32>, vector<16x512xf32> -> vector<16x512xf32>
    %190 = arith.addf %188, %189 : vector<16x512xf32>
    %191 = vector.extract_strided_slice %190 {offsets = [0, 0], sizes = [16, 128], strides = [1, 1]} : vector<16x512xf32> to vector<16x128xf32>
    %192 = arith.negf %191 : vector<16x128xf32>
    %193 = math.exp %192 : vector<16x128xf32>
    %cst_45 = arith.constant 1.000000e+00 : f32
    %194 = vector.broadcast %cst_45 : f32 to vector<16x128xf32>
    %195 = arith.addf %194, %193 : vector<16x128xf32>
    %196 = arith.divf %194, %195 : vector<16x128xf32>
    %197 = vector.extract_strided_slice %190 {offsets = [0, 128], sizes = [16, 128], strides = [1, 1]} : vector<16x512xf32> to vector<16x128xf32>
    %198 = arith.negf %197 : vector<16x128xf32>
    %199 = math.exp %198 : vector<16x128xf32>
    %cst_46 = arith.constant 1.000000e+00 : f32
    %200 = vector.broadcast %cst_46 : f32 to vector<16x128xf32>
    %201 = arith.addf %200, %199 : vector<16x128xf32>
    %202 = arith.divf %200, %201 : vector<16x128xf32>
    %203 = vector.extract_strided_slice %190 {offsets = [0, 256], sizes = [16, 128], strides = [1, 1]} : vector<16x512xf32> to vector<16x128xf32>
    %204 = math.tanh %203 : vector<16x128xf32>
    %205 = vector.extract_strided_slice %190 {offsets = [0, 384], sizes = [16, 128], strides = [1, 1]} : vector<16x512xf32> to vector<16x128xf32>
    %206 = arith.negf %205 : vector<16x128xf32>
    %207 = math.exp %206 : vector<16x128xf32>
    %cst_47 = arith.constant 1.000000e+00 : f32
    %208 = vector.broadcast %cst_47 : f32 to vector<16x128xf32>
    %209 = arith.addf %208, %207 : vector<16x128xf32>
    %210 = arith.divf %208, %209 : vector<16x128xf32>
    %211 = arith.mulf %202, %183 : vector<16x128xf32>
    %212 = arith.mulf %196, %204 : vector<16x128xf32>
    %213 = arith.addf %211, %212 : vector<16x128xf32>
    %214 = math.tanh %213 : vector<16x128xf32>
    %215 = arith.mulf %210, %214 : vector<16x128xf32>
    %c7_i32 = arith.constant 7 : i32
    %216 = arith.index_cast %c7_i32 : i32 to index
    %c0_48 = arith.constant 0 : index
    %c0_49 = arith.constant 0 : index
    %217 = vector.load %arg2[%216, %c0_48, %c0_49] : memref<8x16x512xf32, #tpu.memory_space<vmem>>, vector<1x16x512xf32>
    %218 = vector.shape_cast %217 : vector<1x16x512xf32> to vector<16x512xf32>
    %cst_50 = arith.constant dense<0.000000e+00> : vector<16x512xf32>
    %219 = tpu.matmul %215, %3, %cst_50 {dimension_numbers = #tpu.dot_dimension_numbers<[1], [0], [0], [1], [0, 0, 1, 1], [], []>} : vector<16x128xf32>, vector<128x512xf32>, vector<16x512xf32> -> vector<16x512xf32>
    %220 = arith.addf %218, %219 : vector<16x512xf32>
    %221 = vector.extract_strided_slice %220 {offsets = [0, 0], sizes = [16, 128], strides = [1, 1]} : vector<16x512xf32> to vector<16x128xf32>
    %222 = arith.negf %221 : vector<16x128xf32>
    %223 = math.exp %222 : vector<16x128xf32>
    %cst_51 = arith.constant 1.000000e+00 : f32
    %224 = vector.broadcast %cst_51 : f32 to vector<16x128xf32>
    %225 = arith.addf %224, %223 : vector<16x128xf32>
    %226 = arith.divf %224, %225 : vector<16x128xf32>
    %227 = vector.extract_strided_slice %220 {offsets = [0, 128], sizes = [16, 128], strides = [1, 1]} : vector<16x512xf32> to vector<16x128xf32>
    %228 = arith.negf %227 : vector<16x128xf32>
    %229 = math.exp %228 : vector<16x128xf32>
    %cst_52 = arith.constant 1.000000e+00 : f32
    %230 = vector.broadcast %cst_52 : f32 to vector<16x128xf32>
    %231 = arith.addf %230, %229 : vector<16x128xf32>
    %232 = arith.divf %230, %231 : vector<16x128xf32>
    %233 = vector.extract_strided_slice %220 {offsets = [0, 256], sizes = [16, 128], strides = [1, 1]} : vector<16x512xf32> to vector<16x128xf32>
    %234 = math.tanh %233 : vector<16x128xf32>
    %235 = vector.extract_strided_slice %220 {offsets = [0, 384], sizes = [16, 128], strides = [1, 1]} : vector<16x512xf32> to vector<16x128xf32>
    %236 = arith.negf %235 : vector<16x128xf32>
    %237 = math.exp %236 : vector<16x128xf32>
    %cst_53 = arith.constant 1.000000e+00 : f32
    %238 = vector.broadcast %cst_53 : f32 to vector<16x128xf32>
    %239 = arith.addf %238, %237 : vector<16x128xf32>
    %240 = arith.divf %238, %239 : vector<16x128xf32>
    %241 = arith.mulf %232, %213 : vector<16x128xf32>
    %242 = arith.mulf %226, %234 : vector<16x128xf32>
    %243 = arith.addf %241, %242 : vector<16x128xf32>
    %244 = math.tanh %243 : vector<16x128xf32>
    %245 = arith.mulf %240, %244 : vector<16x128xf32>
    %c8_i32 = arith.constant 8 : i32
    %c0_54 = arith.constant 0 : index
    %c0_55 = arith.constant 0 : index
    %246 = vector.load %arg6[%c0_54, %c0_55] : memref<16x128xf32, #tpu.memory_space<vmem>>, vector<16x128xf32>
    tpu.vector_store %arg6[%c0_54, %c0_55], %245 {strides = array<i32>} : memref<16x128xf32, #tpu.memory_space<vmem>>, vector<16x128xf32>,
    %c0_56 = arith.constant 0 : index
    %c0_57 = arith.constant 0 : index
    %247 = vector.load %arg7[%c0_56, %c0_57] : memref<16x128xf32, #tpu.memory_space<vmem>>, vector<16x128xf32>
    tpu.vector_store %arg7[%c0_56, %c0_57], %243 {strides = array<i32>} : memref<16x128xf32, #tpu.memory_space<vmem>>, vector<16x128xf32>,
    %c0_i32_58 = arith.constant 0 : i32
    %248 = arith.cmpi eq, %arg1, %c0_i32_58 : i32
    %249 = arith.extui %248 : i1 to i32
    %c0_i32_59 = arith.constant 0 : i32
    %250 = arith.cmpi ne, %249, %c0_i32_59 : i32
    scf.if %250 {
      %c0_60 = arith.constant 0 : index
      %c0_61 = arith.constant 0 : index
      %251 = vector.load %arg4[%c0_60, %c0_61] : memref<16x128xf32, #tpu.memory_space<vmem>>, vector<16x128xf32>
      tpu.vector_store %arg4[%c0_60, %c0_61], %245 {strides = array<i32>} : memref<16x128xf32, #tpu.memory_space<vmem>>, vector<16x128xf32>,
    } else {
    }
    return
  }
  func.func @transform_0(%arg0: i32, %arg1: i32) -> (i32, i32, i32) {
    %c0_i32 = arith.constant 0 : i32
    %c0_i32_0 = arith.constant 0 : i32
    return %arg1, %arg0, %c0_i32 : i32, i32, i32
  }
  func.func @transform_2(%arg0: i32, %arg1: i32) -> (i32, i32) {
    %c0_i32 = arith.constant 0 : i32
    %c0_i32_0 = arith.constant 0 : i32
    return %arg0, %c0_i32 : i32, i32
  }
}

</mosaic_0001>

<llo_original>
// kernel: lstm_forward.1
$region0: #{lstm_forward.1}
  #allocation0 [shape = 'u32[]', space=smem, size = 0x4, offset = 0x4, fixed_abs, tag = 'smem constant byte address 0x4 - core index']
  #allocation1 [shape = 'u32[144,128]{1,0:T(1,128)}', space=vmem, size = 0x12000, scoped, tag = 'internal scratch']
  #allocation2 [shape = 'f32[128,512]{1,0:T(8,128)}', space=vmem, size = 0x40000, scoped, tag = 'scratch operand']
  #allocation3 [shape = 'f32[16,128]{1,0:T(8,128)}', space=vmem, size = 0x2000, scoped, tag = 'scratch operand']
  #allocation4 [shape = 'f32[16,128]{1,0:T(8,128)}', space=vmem, size = 0x2000, scoped, tag = 'scratch operand']
  #allocation6 [shape = 's32[]', space=sflag, size = 0x4, offset = 0, fixed_abs, tag = 'sflag constant byte address 0x0 - dummy sync flag']
  %s0 = inlined_call_operand.vmem [shape: f32[8,16,512], index: 0, kind: input, shape index: {}]
  %s1 = inlined_call_operand.vmem [shape: f32[128,512], index: 1, kind: input, shape index: {}]
  %s2 = inlined_call_operand.vmem [shape: f32[16,128], index: 2, kind: output, shape index: {}]
  %s3 = sld [smem:[#allocation0]]
  $region57: #{lstm_forward.1} parent=0
    _
  %s5 = ssub.s32 1, %s3
  %s6 = scalar_select 0, %s5, %s3
  // Predicated region
  $region2: #{lstm_forward.1} parent=0 // pred_check
    _
  $region3: #{lstm_forward.1} parent=0 // pred_check_branch
    %8 = sbr.rel (0) target = $region5
  $region4: #{lstm_forward.1} parent=0 // pred_region
    _
  $region5: #{lstm_forward.1} parent=0 // pred_fallthru
    _
  %p9 = scmp.eq.s32.totalorder 0, 0
  // Predicated region
  $region6: #{lstm_forward.1} parent=0 // pred_check
    %p10 = pneg %p9
  $region7: #{lstm_forward.1} parent=0 // pred_check_branch
    %12 = sbr.rel (%p10) target = $region9
  $region8: #{lstm_forward.1} parent=0 // pred_region
    $region10: #{lstm_forward.1} parent=8
      #allocation5 [shape = 's32[1]{0}', space=sflag, size = 0x4, scoped, tag = 'scoped memory for lstm_forward.1']
      %p14 = scmp.lt.u32.totalorder 512, 8
      %p15 = pneg %p14
      // Predicated region
      $region11: #{lstm_forward.1} parent=10 // pred_check
        _
      $region12: #{lstm_forward.1} parent=10 // pred_check_branch
        %17 = sbr.rel (%p14) target = $region14
      $region13: #{lstm_forward.1} parent=10 // pred_region
        %s32 = sand.u32 512, 7
        %p33 = scmp.eq.s32.totalorder %s32, 0
        // Predicated region
        $region26: #{lstm_forward.1} parent=13 // pred_check
          %p34 = pneg %p33
        $region27: #{lstm_forward.1} parent=13 // pred_check_branch
          %36 = sbr.rel (%p34) target = $region29
        $region28: #{lstm_forward.1} parent=13 // pred_region
          loop: start=0, step=1, limit=1
          $region30: #{lstm_forward.1} parent=28 // loop_pre_header
            _
          $region31: #{lstm_forward.1} parent=28 // loop_header
            %s38 = sphi 0, %s42
            %p39 = scmp.ge.s32.totalorder %s38, 1
            %s43 = sphi %s1, %s1
            %s44 = sphi [#allocation2], [#allocation2]
          $region32: #{lstm_forward.1} parent=28 // loop_header_branch
            %41 = sbr.rel (%p39) target = $region36
          $region33: #{lstm_forward.1} parent=28 // loop_body
            %v45 = vld [vmem:[%s43] sm:$0xff]
            %46 = vst [vmem:[%s44] sm:$0xff] %v45
            %v47 = vld [vmem:[%s43 + $0x8] sm:$0xff]
            %48 = vst [vmem:[%s44 + $0x8] sm:$0xff] %v47
            %v49 = vld [vmem:[%s43 + $0x10] sm:$0xff]
            %50 = vst [vmem:[%s44 + $0x10] sm:$0xff] %v49
            %v51 = vld [vmem:[%s43 + $0x18] sm:$0xff]
            %52 = vst [vmem:[%s44 + $0x18] sm:$0xff] %v51
            %v53 = vld [vmem:[%s43 + $0x20] sm:$0xff]
            %54 = vst [vmem:[%s44 + $0x20] sm:$0xff] %v53
            %v55 = vld [vmem:[%s43 + $0x28] sm:$0xff]
            %56 = vst [vmem:[%s44 + $0x28] sm:$0xff] %v55
            %v57 = vld [vmem:[%s43 + $0x30] sm:$0xff]
            %58 = vst [vmem:[%s44 + $0x30] sm:$0xff] %v57
            %v59 = vld [vmem:[%s43 + $0x38] sm:$0xff]
            %60 = vst [vmem:[%s44 + $0x38] sm:$0xff] %v59
            %v61 = vld [vmem:[%s43 + $0x40] sm:$0xff]
            %62 = vst [vmem:[%s44 + $0x40] sm:$0xff] %v61
            %v63 = vld [vmem:[%s43 + $0x48] sm:$0xff]
            %64 = vst [vmem:[%s44 + $0x48] sm:$0xff] %v63
            %v65 = vld [vmem:[%s43 + $0x50] sm:$0xff]
            %66 = vst [vmem:[%s44 + $0x50] sm:$0xff] %v65
            %v67 = vld [vmem:[%s43 + $0x58] sm:$0xff]
            %68 = vst [vmem:[%s44 + $0x58] sm:$0xff] %v67
            %v69 = vld [vmem:[%s43 + $0x60] sm:$0xff]
            %70 = vst [vmem:[%s44 + $0x60] sm:$0xff] %v69
            %v71 = vld [vmem:[%s43 + $0x68] sm:$0xff]
            %72 = vst [vmem:[%s44 + $0x68] sm:$0xff] %v71
            %v73 = vld [vmem:[%s43 + $0x70] sm:$0xff]
            %74 = vst [vmem:[%s44 + $0x70] sm:$0xff] %v73
            %v75 = vld [vmem:[%s43 + $0x78] sm:$0xff]
            %76 = vst [vmem:[%s44 + $0x78] sm:$0xff] %v75
            %v77 = vld [vmem:[%s43 + $0x80] sm:$0xff]
            %78 = vst [vmem:[%s44 + $0x80] sm:$0xff] %v77
            %v79 = vld [vmem:[%s43 + $0x88] sm:$0xff]
            %80 = vst [vmem:[%s44 + $0x88] sm:$0xff] %v79
            %v81 = vld [vmem:[%s43 + $0x90] sm:$0xff]
            %82 = vst [vmem:[%s44 + $0x90] sm:$0xff] %v81
            %v83 = vld [vmem:[%s43 + $0x98] sm:$0xff]
            %84 = vst [vmem:[%s44 + $0x98] sm:$0xff] %v83
            %v85 = vld [vmem:[%s43 + $0xa0] sm:$0xff]
            %86 = vst [vmem:[%s44 + $0xa0] sm:$0xff] %v85
            %v87 = vld [vmem:[%s43 + $0xa8] sm:$0xff]
            %88 = vst [vmem:[%s44 + $0xa8] sm:$0xff] %v87
            %v89 = vld [vmem:[%s43 + $0xb0] sm:$0xff]
            %90 = vst [vmem:[%s44 + $0xb0] sm:$0xff] %v89
            %v91 = vld [vmem:[%s43 + $0xb8] sm:$0xff]
            %92 = vst [vmem:[%s44 + $0xb8] sm:$0xff] %v91
            %v93 = vld [vmem:[%s43 + $0xc0] sm:$0xff]
            %94 = vst [vmem:[%s44 + $0xc0] sm:$0xff] %v93
            %v95 = vld [vmem:[%s43 + $0xc8] sm:$0xff]
            %96 = vst [vmem:[%s44 + $0xc8] sm:$0xff] %v95
            %v97 = vld [vmem:[%s43 + $0xd0] sm:$0xff]
            %98 = vst [vmem:[%s44 + $0xd0] sm:$0xff] %v97
            %v99 = vld [vmem:[%s43 + $0xd8] sm:$0xff]
            %100 = vst [vmem:[%s44 + $0xd8] sm:$0xff] %v99
            %v101 = vld [vmem:[%s43 + $0xe0] sm:$0xff]
            %102 = vst [vmem:[%s44 + $0xe0] sm:$0xff] %v101
            %v103 = vld [vmem:[%s43 + $0xe8] sm:$0xff]
            %104 = vst [vmem:[%s44 + $0xe8] sm:$0xff] %v103
            %v105 = vld [vmem:[%s43 + $0xf0] sm:$0xff]
            %106 = vst [vmem:[%s44 + $0xf0] sm:$0xff] %v105
            %v107 = vld [vmem:[%s43 + $0xf8] sm:$0xff]
            %108 = vst [vmem:[%s44 + $0xf8] sm:$0xff] %v107
            %v109 = vld [vmem:[%s43 + $0x100] sm:$0xff]
            %110 = vst [vmem:[%s44 + $0x100] sm:$0xff] %v109
            %v111 = vld [vmem:[%s43 + $0x108] sm:$0xff]
            %112 = vst [vmem:[%s44 + $0x108] sm:$0xff] %v111
            %v113 = vld [vmem:[%s43 + $0x110] sm:$0xff]
            %114 = vst [vmem:[%s44 + $0x110] sm:$0xff] %v113
            %v115 = vld [vmem:[%s43 + $0x118] sm:$0xff]
            %116 = vst [vmem:[%s44 + $0x118] sm:$0xff] %v115
            %v117 = vld [vmem:[%s43 + $0x120] sm:$0xff]
            %118 = vst [vmem:[%s44 + $0x120] sm:$0xff] %v117
            %v119 = vld [vmem:[%s43 + $0x128] sm:$0xff]
            %120 = vst [vmem:[%s44 + $0x128] sm:$0xff] %v119
            %v121 = vld [vmem:[%s43 + $0x130] sm:$0xff]
            %122 = vst [vmem:[%s44 + $0x130] sm:$0xff] %v121
            %v123 = vld [vmem:[%s43 + $0x138] sm:$0xff]
            %124 = vst [vmem:[%s44 + $0x138] sm:$0xff] %v123
            %v125 = vld [vmem:[%s43 + $0x140] sm:$0xff]
            %126 = vst [vmem:[%s44 + $0x140] sm:$0xff] %v125
            %v127 = vld [vmem:[%s43 + $0x148] sm:$0xff]
            %128 = vst [vmem:[%s44 + $0x148] sm:$0xff] %v127
            %v129 = vld [vmem:[%s43 + $0x150] sm:$0xff]
            %130 = vst [vmem:[%s44 + $0x150] sm:$0xff] %v129
            %v131 = vld [vmem:[%s43 + $0x158] sm:$0xff]
            %132 = vst [vmem:[%s44 + $0x158] sm:$0xff] %v131
            %v133 = vld [vmem:[%s43 + $0x160] sm:$0xff]
            %134 = vst [vmem:[%s44 + $0x160] sm:$0xff] %v133
            %v135 = vld [vmem:[%s43 + $0x168] sm:$0xff]
            %136 = vst [vmem:[%s44 + $0x168] sm:$0xff] %v135
            %v137 = vld [vmem:[%s43 + $0x170] sm:$0xff]
            %138 = vst [vmem:[%s44 + $0x170] sm:$0xff] %v137
            %v139 = vld [vmem:[%s43 + $0x178] sm:$0xff]
            %140 = vst [vmem:[%s44 + $0x178] sm:$0xff] %v139
            %v141 = vld [vmem:[%s43 + $0x180] sm:$0xff]
            %142 = vst [vmem:[%s44 + $0x180] sm:$0xff] %v141
            %v143 = vld [vmem:[%s43 + $0x188] sm:$0xff]
            %144 = vst [vmem:[%s44 + $0x188] sm:$0xff] %v143
            %v145 = vld [vmem:[%s43 + $0x190] sm:$0xff]
            %146 = vst [vmem:[%s44 + $0x190] sm:$0xff] %v145
            %v147 = vld [vmem:[%s43 + $0x198] sm:$0xff]
            %148 = vst [vmem:[%s44 + $0x198] sm:$0xff] %v147
            %v149 = vld [vmem:[%s43 + $0x1a0] sm:$0xff]
            %150 = vst [vmem:[%s44 + $0x1a0] sm:$0xff] %v149
            %v151 = vld [vmem:[%s43 + $0x1a8] sm:$0xff]
            %152 = vst [vmem:[%s44 + $0x1a8] sm:$0xff] %v151
            %v153 = vld [vmem:[%s43 + $0x1b0] sm:$0xff]
            %154 = vst [vmem:[%s44 + $0x1b0] sm:$0xff] %v153
            %v155 = vld [vmem:[%s43 + $0x1b8] sm:$0xff]
            %156 = vst [vmem:[%s44 + $0x1b8] sm:$0xff] %v155
            %v157 = vld [vmem:[%s43 + $0x1c0] sm:$0xff]
            %158 = vst [vmem:[%s44 + $0x1c0] sm:$0xff] %v157
            %v159 = vld [vmem:[%s43 + $0x1c8] sm:$0xff]
            %160 = vst [vmem:[%s44 + $0x1c8] sm:$0xff] %v159
            %v161 = vld [vmem:[%s43 + $0x1d0] sm:$0xff]
            %162 = vst [vmem:[%s44 + $0x1d0] sm:$0xff] %v161
            %v163 = vld [vmem:[%s43 + $0x1d8] sm:$0xff]
            %164 = vst [vmem:[%s44 + $0x1d8] sm:$0xff] %v163
            %v165 = vld [vmem:[%s43 + $0x1e0] sm:$0xff]
            %166 = vst [vmem:[%s44 + $0x1e0] sm:$0xff] %v165
            %v167 = vld [vmem:[%s43 + $0x1e8] sm:$0xff]
            %168 = vst [vmem:[%s44 + $0x1e8] sm:$0xff] %v167
            %v169 = vld [vmem:[%s43 + $0x1f0] sm:$0xff]
            %170 = vst [vmem:[%s44 + $0x1f0] sm:$0xff] %v169
            %v171 = vld [vmem:[%s43 + $0x1f8] sm:$0xff]
            %172 = vst [vmem:[%s44 + $0x1f8] sm:$0xff] %v171
          $region34: #{lstm_forward.1} parent=28 // loop_footer
            %s42 = sadd.s32 1, %s38
          $region35: #{lstm_forward.1} parent=28 // loop_footer_branch
            %37 = sbr.rel target = $region31
          $region36: #{lstm_forward.1} parent=28 // loop_exit
            _
        $region29: #{lstm_forward.1} parent=13 // pred_fallthru
          _
        %p173 = pneg %p33
        // Predicated region
        $region37: #{lstm_forward.1} parent=13 // pred_check
          _
        $region38: #{lstm_forward.1} parent=13 // pred_check_branch
          %175 = sbr.rel (%p33) target = $region40
        $region39: #{lstm_forward.1} parent=13 // pred_region
          %s176 = sand.u32 512, 7
        $region40: #{lstm_forward.1} parent=13 // pred_fallthru
          _
      $region14: #{lstm_forward.1} parent=10 // pred_fallthru
        _
      // Predicated region
      $region15: #{lstm_forward.1} parent=10 // pred_check
        %p18 = pneg %p14
      $region16: #{lstm_forward.1} parent=10 // pred_check_branch
        %20 = sbr.rel (%p18) target = $region18
      $region17: #{lstm_forward.1} parent=10 // pred_region
        %s21 = sshllo.u32 0, 512
        loop: start=0, step=1, limit=1
        $region19: #{lstm_forward.1} parent=17 // loop_pre_header
          _
        $region20: #{lstm_forward.1} parent=17 // loop_header
          %s23 = sphi 0, %s27
          %p24 = scmp.ge.s32.totalorder %s23, 1
          %s28 = sphi %s1, %s1
          %s29 = sphi [#allocation2], [#allocation2]
        $region21: #{lstm_forward.1} parent=17 // loop_header_branch
          %26 = sbr.rel (%p24) target = $region25
        $region22: #{lstm_forward.1} parent=17 // loop_body
          %v30 = vld [vmem:[%s28] sm:%s21]
          %31 = vst [vmem:[%s29] sm:%s21] %v30
        $region23: #{lstm_forward.1} parent=17 // loop_footer
          %s27 = sadd.s32 1, %s23
        $region24: #{lstm_forward.1} parent=17 // loop_footer_branch
          %22 = sbr.rel target = $region20
        $region25: #{lstm_forward.1} parent=17 // loop_exit
          _
      $region18: #{lstm_forward.1} parent=10 // pred_fallthru
        _
      // Predicated region
      $region41: #{lstm_forward.1} parent=10 // pred_check
        _
      $region42: #{lstm_forward.1} parent=10 // pred_check_branch
        %179 = sbr.rel (0) target = $region44
      $region43: #{lstm_forward.1} parent=10 // pred_region
        %180 = vsyncadd [#allocation5], 8192
      $region44: #{lstm_forward.1} parent=10 // pred_fallthru
        _
      %s181 = smul.u32 8, 16
      %s182 = smul.u32 %s181, 4
      %s183 = sshll.u32 %s182, 4
      %184 = dma.done [#allocation5], %s183
    %185 = vst [vmem:[#allocation3] sm:$0xff] 0.0
    %186 = vst [vmem:[#allocation3 + $0x8] sm:$0xff] 0.0
    %187 = vst [vmem:[#allocation4] sm:$0xff] 0.0
    %188 = vst [vmem:[#allocation4 + $0x8] sm:$0xff] 0.0
  $region9: #{lstm_forward.1} parent=0 // pred_fallthru
    _
  %v189 = vld [vmem:[#allocation2] sm:$0xff]
  %v190 = vld [vmem:[#allocation2 + $0x8] sm:$0xff]
  %v191 = vld [vmem:[#allocation2 + $0x10] sm:$0xff]
  %v192 = vld [vmem:[#allocation2 + $0x18] sm:$0xff]
  %v193 = vld [vmem:[#allocation2 + $0x20] sm:$0xff]
  %v194 = vld [vmem:[#allocation2 + $0x28] sm:$0xff]
  %v195 = vld [vmem:[#allocation2 + $0x30] sm:$0xff]
  %v196 = vld [vmem:[#allocation2 + $0x38] sm:$0xff]
  %v197 = vld [vmem:[#allocation2 + $0x40] sm:$0xff]
  %v198 = vld [vmem:[#allocation2 + $0x48] sm:$0xff]
  %v199 = vld [vmem:[#allocation2 + $0x50] sm:$0xff]
  %v200 = vld [vmem:[#allocation2 + $0x58] sm:$0xff]
  %v201 = vld [vmem:[#allocation2 + $0x60] sm:$0xff]
  %v202 = vld [vmem:[#allocation2 + $0x68] sm:$0xff]
  %v203 = vld [vmem:[#allocation2 + $0x70] sm:$0xff]
  %v204 = vld [vmem:[#allocation2 + $0x78] sm:$0xff]
  %v205 = vld [vmem:[#allocation2 + $0x80] sm:$0xff]
  %v206 = vld [vmem:[#allocation2 + $0x88] sm:$0xff]
  %v207 = vld [vmem:[#allocation2 + $0x90] sm:$0xff]
  %v208 = vld [vmem:[#allocation2 + $0x98] sm:$0xff]
  %v209 = vld [vmem:[#allocation2 + $0xa0] sm:$0xff]
  %v210 = vld [vmem:[#allocation2 + $0xa8] sm:$0xff]
  %v211 = vld [vmem:[#allocation2 + $0xb0] sm:$0xff]
  %v212 = vld [vmem:[#allocation2 + $0xb8] sm:$0xff]
  %v213 = vld [vmem:[#allocation2 + $0xc0] sm:$0xff]
  %v214 = vld [vmem:[#allocation2 + $0xc8] sm:$0xff]
  %v215 = vld [vmem:[#allocation2 + $0xd0] sm:$0xff]
  %v216 = vld [vmem:[#allocation2 + $0xd8] sm:$0xff]
  %v217 = vld [vmem:[#allocation2 + $0xe0] sm:$0xff]
  %v218 = vld [vmem:[#allocation2 + $0xe8] sm:$0xff]
  %v219 = vld [vmem:[#allocation2 + $0xf0] sm:$0xff]
  %v220 = vld [vmem:[#allocation2 + $0xf8] sm:$0xff]
  %v221 = vld [vmem:[#allocation2 + $0x100] sm:$0xff]
  %v222 = vld [vmem:[#allocation2 + $0x108] sm:$0xff]
  %v223 = vld [vmem:[#allocation2 + $0x110] sm:$0xff]
  %v224 = vld [vmem:[#allocation2 + $0x118] sm:$0xff]
  %v225 = vld [vmem:[#allocation2 + $0x120] sm:$0xff]
  %v226 = vld [vmem:[#allocation2 + $0x128] sm:$0xff]
  %v227 = vld [vmem:[#allocation2 + $0x130] sm:$0xff]
  %v228 = vld [vmem:[#allocation2 + $0x138] sm:$0xff]
  %v229 = vld [vmem:[#allocation2 + $0x140] sm:$0xff]
  %v230 = vld [vmem:[#allocation2 + $0x148] sm:$0xff]
  %v231 = vld [vmem:[#allocation2 + $0x150] sm:$0xff]
  %v232 = vld [vmem:[#allocation2 + $0x158] sm:$0xff]
  %v233 = vld [vmem:[#allocation2 + $0x160] sm:$0xff]
  %v234 = vld [vmem:[#allocation2 + $0x168] sm:$0xff]
  %v235 = vld [vmem:[#allocation2 + $0x170] sm:$0xff]
  %v236 = vld [vmem:[#allocation2 + $0x178] sm:$0xff]
  %v237 = vld [vmem:[#allocation2 + $0x180] sm:$0xff]
  %v238 = vld [vmem:[#allocation2 + $0x188] sm:$0xff]
  %v239 = vld [vmem:[#allocation2 + $0x190] sm:$0xff]
  %v240 = vld [vmem:[#allocation2 + $0x198] sm:$0xff]
  %v241 = vld [vmem:[#allocation2 + $0x1a0] sm:$0xff]
  %v242 = vld [vmem:[#allocation2 + $0x1a8] sm:$0xff]
  %v243 = vld [vmem:[#allocation2 + $0x1b0] sm:$0xff]
  %v244 = vld [vmem:[#allocation2 + $0x1b8] sm:$0xff]
  %v245 = vld [vmem:[#allocation2 + $0x1c0] sm:$0xff]
  %v246 = vld [vmem:[#allocation2 + $0x1c8] sm:$0xff]
  %v247 = vld [vmem:[#allocation2 + $0x1d0] sm:$0xff]
  %v248 = vld [vmem:[#allocation2 + $0x1d8] sm:$0xff]
  %v249 = vld [vmem:[#allocation2 + $0x1e0] sm:$0xff]
  %v250 = vld [vmem:[#allocation2 + $0x1e8] sm:$0xff]
  %v251 = vld [vmem:[#allocation2 + $0x1f0] sm:$0xff]
  %v252 = vld [vmem:[#allocation2 + $0x1f8] sm:$0xff]
  %v253 = vld [vmem:[#allocation3] sm:$0xff]
  %v254 = vld [vmem:[#allocation3 + $0x8] sm:$0xff]
  %v255 = vld [vmem:[#allocation4] sm:$0xff]
  %v256 = vld [vmem:[#allocation4 + $0x8] sm:$0xff]
  %v257 = vld [vmem:[%s0] sm:$0xff]
  %v258 = vld [vmem:[%s0 + $0x8] sm:$0xff]
  %v259 = vld [vmem:[%s0 + $0x10] sm:$0xff]
  %v260 = vld [vmem:[%s0 + $0x18] sm:$0xff]
  %v261 = vld [vmem:[%s0 + $0x20] sm:$0xff]
  %v262 = vld [vmem:[%s0 + $0x28] sm:$0xff]
  %v263 = vld [vmem:[%s0 + $0x30] sm:$0xff]
  %v264 = vld [vmem:[%s0 + $0x38] sm:$0xff]
  %265 = vmatprep.subr.mxu0 %v190
  %266 = vmatpush1.msra.mxu0 %v189
  %267 = vmatprep.subr.mxu0 %v194
  %268 = vmatpush1.msra.mxu0 %v193
  %269 = vmatprep.subr.mxu0 %v198
  %270 = vmatpush1.msra.mxu0 %v197
  %271 = vmatprep.subr.mxu0 %v202
  %272 = vmatpush1.msra.mxu0 %v201
  %273 = vmatprep.subr.mxu0 %v206
  %274 = vmatpush1.msra.mxu0 %v205
  %275 = vmatprep.subr.mxu0 %v210
  %276 = vmatpush1.msra.mxu0 %v209
  %277 = vmatprep.subr.mxu0 %v214
  %278 = vmatpush1.msra.mxu0 %v213
  %279 = vmatprep.subr.mxu0 %v218
  %280 = vmatpush1.msra.mxu0 %v217
  %281 = vmatprep.subr.mxu0 %v222
  %282 = vmatpush1.msra.mxu0 %v221
  %283 = vmatprep.subr.mxu0 %v226
  %284 = vmatpush1.msra.mxu0 %v225
  %285 = vmatprep.subr.mxu0 %v230
  %286 = vmatpush1.msra.mxu0 %v229
  %287 = vmatprep.subr.mxu0 %v234
  %288 = vmatpush1.msra.mxu0 %v233
  %289 = vmatprep.subr.mxu0 %v238
  %290 = vmatpush1.msra.mxu0 %v237
  %291 = vmatprep.subr.mxu0 %v242
  %292 = vmatpush1.msra.mxu0 %v241
  %293 = vmatprep.subr.mxu0 %v246
  %294 = vmatpush1.msra.mxu0 %v245
  %295 = vmatprep.subr.mxu0 %v250
  %296 = vmatpush1.msra.mxu0 %v249
  %297 = vmatprep.subr.mxu0 0.0
  %298 = vmatpush1.msra.mxu0 0.0
  %299 = vmatprep.subr.mxu0 0.0
  %300 = vmatpush1.msra.mxu0 0.0
  %301 = vmatprep.subr.mxu0 0.0
  %302 = vmatpush1.msra.mxu0 0.0
  %303 = vmatprep.subr.mxu0 0.0
  %304 = vmatpush1.msra.mxu0 0.0
  %305 = vmatprep.subr.mxu0 0.0
  %306 = vmatpush1.msra.mxu0 0.0
  %307 = vmatprep.subr.mxu0 0.0
  %308 = vmatpush1.msra.mxu0 0.0
  %309 = vmatprep.subr.mxu0 0.0
  %310 = vmatpush1.msra.mxu0 0.0
  %311 = vmatprep.subr.mxu0 0.0
  %312 = vmatpush1.msra.mxu0 0.0
  %313 = vmatprep.subr.mxu0 0.0
  %314 = vmatpush1.msra.mxu0 0.0
  %315 = vmatprep.subr.mxu0 0.0
  %316 = vmatpush1.msra.mxu0 0.0
  %317 = vmatprep.subr.mxu0 0.0
  %318 = vmatpush1.msra.mxu0 0.0
  %319 = vmatprep.subr.mxu0 0.0
  %320 = vmatpush1.msra.mxu0 0.0
  %321 = vmatprep.subr.mxu0 0.0
  %322 = vmatpush1.msra.mxu0 0.0
  %323 = vmatprep.subr.mxu0 0.0
  %324 = vmatpush1.msra.mxu0 0.0
  %325 = vmatprep.subr.mxu0 0.0
  %326 = vmatpush1.msra.mxu0 0.0
  %327 = vmatprep.subr.mxu0 0.0
  %328 = vmatpush1.msra.mxu0 0.0
  %329 = vmatprep.mubr.f32.mxu0 0.0
  %330 = vmatmul.mubr.f32.gmra.mrb[0].mxu0 %v253
  %v331 = vpop.f32.mrb[0].mxu0
  %v332 = vadd.f32 0.0, %v331
  %v333 = vpop.f32.mrb[0].mxu0
  %v334 = vadd.f32 0.0, %v333
  %335 = vmatprep.mubr.f32.mxu0 0.0
  %336 = vmatmul.mubr.f32.gmra.mrb[0].mxu0 %v254
  %v337 = vpop.f32.mrb[0].mxu0
  %v338 = vadd.f32 0.0, %v337
  %v339 = vpop.f32.mrb[0].mxu0
  %v340 = vadd.f32 0.0, %v339
  %341 = vdwg.mxu0
  %342 = vmatprep.subr.mxu0 %v192
  %343 = vmatpush1.msra.mxu0 %v191
  %344 = vmatprep.subr.mxu0 %v196
  %345 = vmatpush1.msra.mxu0 %v195
  %346 = vmatprep.subr.mxu0 %v200
  %347 = vmatpush1.msra.mxu0 %v199
  %348 = vmatprep.subr.mxu0 %v204
  %349 = vmatpush1.msra.mxu0 %v203
  %350 = vmatprep.subr.mxu0 %v208
  %351 = vmatpush1.msra.mxu0 %v207
  %352 = vmatprep.subr.mxu0 %v212
  %353 = vmatpush1.msra.mxu0 %v211
  %354 = vmatprep.subr.mxu0 %v216
  %355 = vmatpush1.msra.mxu0 %v215
  %356 = vmatprep.subr.mxu0 %v220
  %357 = vmatpush1.msra.mxu0 %v219
  %358 = vmatprep.subr.mxu0 %v224
  %359 = vmatpush1.msra.mxu0 %v223
  %360 = vmatprep.subr.mxu0 %v228
  %361 = vmatpush1.msra.mxu0 %v227
  %362 = vmatprep.subr.mxu0 %v232
  %363 = vmatpush1.msra.mxu0 %v231
  %364 = vmatprep.subr.mxu0 %v236
  %365 = vmatpush1.msra.mxu0 %v235
  %366 = vmatprep.subr.mxu0 %v240
  %367 = vmatpush1.msra.mxu0 %v239
  %368 = vmatprep.subr.mxu0 %v244
  %369 = vmatpush1.msra.mxu0 %v243
  %370 = vmatprep.subr.mxu0 %v248
  %371 = vmatpush1.msra.mxu0 %v247
  %372 = vmatprep.subr.mxu0 %v252
  %373 = vmatpush1.msra.mxu0 %v251
  %374 = vmatprep.subr.mxu0 0.0
  %375 = vmatpush1.msra.mxu0 0.0
  %376 = vmatprep.subr.mxu0 0.0
  %377 = vmatpush1.msra.mxu0 0.0
  %378 = vmatprep.subr.mxu0 0.0
  %379 = vmatpush1.msra.mxu0 0.0
  %380 = vmatprep.subr.mxu0 0.0
  %381 = vmatpush1.msra.mxu0 0.0
  %382 = vmatprep.subr.mxu0 0.0
  %383 = vmatpush1.msra.mxu0 0.0
  %384 = vmatprep.subr.mxu0 0.0
  %385 = vmatpush1.msra.mxu0 0.0
  %386 = vmatprep.subr.mxu0 0.0
  %387 = vmatpush1.msra.mxu0 0.0
  %388 = vmatprep.subr.mxu0 0.0
  %389 = vmatpush1.msra.mxu0 0.0
  %390 = vmatprep.subr.mxu0 0.0
  %391 = vmatpush1.msra.mxu0 0.0
  %392 = vmatprep.subr.mxu0 0.0
  %393 = vmatpush1.msra.mxu0 0.0
  %394 = vmatprep.subr.mxu0 0.0
  %395 = vmatpush1.msra.mxu0 0.0
  %396 = vmatprep.subr.mxu0 0.0
  %397 = vmatpush1.msra.mxu0 0.0
  %398 = vmatprep.subr.mxu0 0.0
  %399 = vmatpush1.msra.mxu0 0.0
  %400 = vmatprep.subr.mxu0 0.0
  %401 = vmatpush1.msra.mxu0 0.0
  %402 = vmatprep.subr.mxu0 0.0
  %403 = vmatpush1.msra.mxu0 0.0
  %404 = vmatprep.subr.mxu0 0.0
  %405 = vmatpush1.msra.mxu0 0.0
  %406 = vmatprep.mubr.f32.mxu0 0.0
  %407 = vmatmul.mubr.f32.gmra.mrb[0].mxu0 %v253
  %v408 = vpop.f32.mrb[0].mxu0
  %v409 = vadd.f32 0.0, %v408
  %v410 = vpop.f32.mrb[0].mxu0
  %v411 = vadd.f32 0.0, %v410
  %412 = vmatprep.mubr.f32.mxu0 0.0
  %413 = vmatmul.mubr.f32.gmra.mrb[0].mxu0 %v254
  %v414 = vpop.f32.mrb[0].mxu0
  %v415 = vadd.f32 0.0, %v414
  %v416 = vpop.f32.mrb[0].mxu0
  %v417 = vadd.f32 0.0, %v416
  %418 = vdwg.mxu0
  %v419 = vadd.f32 %v257, %v332
  %v420 = vadd.f32 %v258, %v334
  %v421 = vadd.f32 %v259, %v409
  %v422 = vadd.f32 %v260, %v411
  %v423 = vadd.f32 %v261, %v338
  %v424 = vadd.f32 %v262, %v340
  %v425 = vadd.f32 %v263, %v415
  %v426 = vadd.f32 %v264, %v417
  %v427 = vxor.u32 %v419, 2147483648
  %v428 = vxor.u32 %v423, 2147483648
  %v429 = vmul.f32 %v427, 1.442695
  %v430 = vpow.pop %v429
  %v431 = vmul.f32 %v428, 1.442695
  %v432 = vpow.pop %v431
  %v433 = vadd.f32 %v430, 1.0
  %v434 = vadd.f32 %v432, 1.0
  %v435 = vrcp.pop %v433
  %v436 = vmul.f32 1.0, %v435
  %v437 = vrcp.pop %v434
  %v438 = vmul.f32 1.0, %v437
  %v439 = vxor.u32 %v420, 2147483648
  %v440 = vxor.u32 %v424, 2147483648
  %v441 = vmul.f32 %v439, 1.442695
  %v442 = vpow.pop %v441
  %v443 = vmul.f32 %v440, 1.442695
  %v444 = vpow.pop %v443
  %v445 = vadd.f32 %v442, 1.0
  %v446 = vadd.f32 %v444, 1.0
  %v447 = vrcp.pop %v445
  %v448 = vmul.f32 1.0, %v447
  %v449 = vrcp.pop %v446
  %v450 = vmul.f32 1.0, %v449
  %v451 = vtanh.pop %v421
  %v452 = vtanh.pop %v425
  %v453 = vxor.u32 %v422, 2147483648
  %v454 = vxor.u32 %v426, 2147483648
  %v455 = vmul.f32 %v453, 1.442695
  %v456 = vpow.pop %v455
  %v457 = vmul.f32 %v454, 1.442695
  %v458 = vpow.pop %v457
  %v459 = vadd.f32 %v456, 1.0
  %v460 = vadd.f32 %v458, 1.0
  %v461 = vrcp.pop %v459
  %v462 = vmul.f32 1.0, %v461
  %v463 = vrcp.pop %v460
  %v464 = vmul.f32 1.0, %v463
  %v465 = vmul.f32 %v448, %v255
  %v466 = vmul.f32 %v450, %v256
  %v467 = vmul.f32 %v436, %v451
  %v468 = vmul.f32 %v438, %v452
  %v469 = vadd.f32 %v465, %v467
  %v470 = vadd.f32 %v466, %v468
  %v471 = vtanh.pop %v469
  %v472 = vtanh.pop %v470
  %v473 = vmul.f32 %v462, %v471
  %v474 = vmul.f32 %v464, %v472
  %s475 = scalar_lea.vmem %s0, 64
  %v476 = vld [vmem:[%s475] sm:$0xff]
  %v477 = vld [vmem:[%s475 + $0x8] sm:$0xff]
  %v478 = vld [vmem:[%s475 + $0x10] sm:$0xff]
  %v479 = vld [vmem:[%s475 + $0x18] sm:$0xff]
  %v480 = vld [vmem:[%s475 + $0x20] sm:$0xff]
  %v481 = vld [vmem:[%s475 + $0x28] sm:$0xff]
  %v482 = vld [vmem:[%s475 + $0x30] sm:$0xff]
  %v483 = vld [vmem:[%s475 + $0x38] sm:$0xff]
  %484 = vmatprep.subr.mxu0 %v190
  %485 = vmatpush1.msra.mxu0 %v189
  %486 = vmatprep.subr.mxu0 %v194
  %487 = vmatpush1.msra.mxu0 %v193
  %488 = vmatprep.subr.mxu0 %v198
  %489 = vmatpush1.msra.mxu0 %v197
  %490 = vmatprep.subr.mxu0 %v202
  %491 = vmatpush1.msra.mxu0 %v201
  %492 = vmatprep.subr.mxu0 %v206
  %493 = vmatpush1.msra.mxu0 %v205
  %494 = vmatprep.subr.mxu0 %v210
  %495 = vmatpush1.msra.mxu0 %v209
  %496 = vmatprep.subr.mxu0 %v214
  %497 = vmatpush1.msra.mxu0 %v213
  %498 = vmatprep.subr.mxu0 %v218
  %499 = vmatpush1.msra.mxu0 %v217
  %500 = vmatprep.subr.mxu0 %v222
  %501 = vmatpush1.msra.mxu0 %v221
  %502 = vmatprep.subr.mxu0 %v226
  %503 = vmatpush1.msra.mxu0 %v225
  %504 = vmatprep.subr.mxu0 %v230
  %505 = vmatpush1.msra.mxu0 %v229
  %506 = vmatprep.subr.mxu0 %v234
  %507 = vmatpush1.msra.mxu0 %v233
  %508 = vmatprep.subr.mxu0 %v238
  %509 = vmatpush1.msra.mxu0 %v237
  %510 = vmatprep.subr.mxu0 %v242
  %511 = vmatpush1.msra.mxu0 %v241
  %512 = vmatprep.subr.mxu0 %v246
  %513 = vmatpush1.msra.mxu0 %v245
  %514 = vmatprep.subr.mxu0 %v250
  %515 = vmatpush1.msra.mxu0 %v249
  %516 = vmatprep.subr.mxu0 0.0
  %517 = vmatpush1.msra.mxu0 0.0
  %518 = vmatprep.subr.mxu0 0.0
  %519 = vmatpush1.msra.mxu0 0.0
  %520 = vmatprep.subr.mxu0 0.0
  %521 = vmatpush1.msra.mxu0 0.0
  %522 = vmatprep.subr.mxu0 0.0
  %523 = vmatpush1.msra.mxu0 0.0
  %524 = vmatprep.subr.mxu0 0.0
  %525 = vmatpush1.msra.mxu0 0.0
  %526 = vmatprep.subr.mxu0 0.0
  %527 = vmatpush1.msra.mxu0 0.0
  %528 = vmatprep.subr.mxu0 0.0
  %529 = vmatpush1.msra.mxu0 0.0
  %530 = vmatprep.subr.mxu0 0.0
  %531 = vmatpush1.msra.mxu0 0.0
  %532 = vmatprep.subr.mxu0 0.0
  %533 = vmatpush1.msra.mxu0 0.0
  %534 = vmatprep.subr.mxu0 0.0
  %535 = vmatpush1.msra.mxu0 0.0
  %536 = vmatprep.subr.mxu0 0.0
  %537 = vmatpush1.msra.mxu0 0.0
  %538 = vmatprep.subr.mxu0 0.0
  %539 = vmatpush1.msra.mxu0 0.0
  %540 = vmatprep.subr.mxu0 0.0
  %541 = vmatpush1.msra.mxu0 0.0
  %542 = vmatprep.subr.mxu0 0.0
  %543 = vmatpush1.msra.mxu0 0.0
  %544 = vmatprep.subr.mxu0 0.0
  %545 = vmatpush1.msra.mxu0 0.0
  %546 = vmatprep.subr.mxu0 0.0
  %547 = vmatpush1.msra.mxu0 0.0
  %548 = vmatprep.mubr.f32.mxu0 0.0
  %549 = vmatmul.mubr.f32.gmra.mrb[0].mxu0 %v473
  %v550 = vpop.f32.mrb[0].mxu0
  %v551 = vadd.f32 0.0, %v550
  %v552 = vpop.f32.mrb[0].mxu0
  %v553 = vadd.f32 0.0, %v552
  %554 = vmatprep.mubr.f32.mxu0 0.0
  %555 = vmatmul.mubr.f32.gmra.mrb[0].mxu0 %v474
  %v556 = vpop.f32.mrb[0].mxu0
  %v557 = vadd.f32 0.0, %v556
  %v558 = vpop.f32.mrb[0].mxu0
  %v559 = vadd.f32 0.0, %v558
  %560 = vdwg.mxu0
  %561 = vmatprep.subr.mxu0 %v192
  %562 = vmatpush1.msra.mxu0 %v191
  %563 = vmatprep.subr.mxu0 %v196
  %564 = vmatpush1.msra.mxu0 %v195
  %565 = vmatprep.subr.mxu0 %v200
  %566 = vmatpush1.msra.mxu0 %v199
  %567 = vmatprep.subr.mxu0 %v204
  %568 = vmatpush1.msra.mxu0 %v203
  %569 = vmatprep.subr.mxu0 %v208
  %570 = vmatpush1.msra.mxu0 %v207
  %571 = vmatprep.subr.mxu0 %v212
  %572 = vmatpush1.msra.mxu0 %v211
  %573 = vmatprep.subr.mxu0 %v216
  %574 = vmatpush1.msra.mxu0 %v215
  %575 = vmatprep.subr.mxu0 %v220
  %576 = vmatpush1.msra.mxu0 %v219
  %577 = vmatprep.subr.mxu0 %v224
  %578 = vmatpush1.msra.mxu0 %v223
  %579 = vmatprep.subr.mxu0 %v228
  %580 = vmatpush1.msra.mxu0 %v227
  %581 = vmatprep.subr.mxu0 %v232
  %582 = vmatpush1.msra.mxu0 %v231
  %583 = vmatprep.subr.mxu0 %v236
  %584 = vmatpush1.msra.mxu0 %v235
  %585 = vmatprep.subr.mxu0 %v240
  %586 = vmatpush1.msra.mxu0 %v239
  %587 = vmatprep.subr.mxu0 %v244
  %588 = vmatpush1.msra.mxu0 %v243
  %589 = vmatprep.subr.mxu0 %v248
  %590 = vmatpush1.msra.mxu0 %v247
  %591 = vmatprep.subr.mxu0 %v252
  %592 = vmatpush1.msra.mxu0 %v251
  %593 = vmatprep.subr.mxu0 0.0
  %594 = vmatpush1.msra.mxu0 0.0
  %595 = vmatprep.subr.mxu0 0.0
  %596 = vmatpush1.msra.mxu0 0.0
  %597 = vmatprep.subr.mxu0 0.0
  %598 = vmatpush1.msra.mxu0 0.0
  %599 = vmatprep.subr.mxu0 0.0
  %600 = vmatpush1.msra.mxu0 0.0
  %601 = vmatprep.subr.mxu0 0.0
  %602 = vmatpush1.msra.mxu0 0.0
  %603 = vmatprep.subr.mxu0 0.0
  %604 = vmatpush1.msra.mxu0 0.0
  %605 = vmatprep.subr.mxu0 0.0
  %606 = vmatpush1.msra.mxu0 0.0
  %607 = vmatprep.subr.mxu0 0.0
  %608 = vmatpush1.msra.mxu0 0.0
  %609 = vmatprep.subr.mxu0 0.0
  %610 = vmatpush1.msra.mxu0 0.0
  %611 = vmatprep.subr.mxu0 0.0
  %612 = vmatpush1.msra.mxu0 0.0
  %613 = vmatprep.subr.mxu0 0.0
  %614 = vmatpush1.msra.mxu0 0.0
  %615 = vmatprep.subr.mxu0 0.0
  %616 = vmatpush1.msra.mxu0 0.0
  %617 = vmatprep.subr.mxu0 0.0
  %618 = vmatpush1.msra.mxu0 0.0
  %619 = vmatprep.subr.mxu0 0.0
  %620 = vmatpush1.msra.mxu0 0.0
  %621 = vmatprep.subr.mxu0 0.0
  %622 = vmatpush1.msra.mxu0 0.0
  %623 = vmatprep.subr.mxu0 0.0
  %624 = vmatpush1.msra.mxu0 0.0
  %625 = vmatprep.mubr.f32.mxu0 0.0
  %626 = vmatmul.mubr.f32.gmra.mrb[0].mxu0 %v473
  %v627 = vpop.f32.mrb[0].mxu0
  %v628 = vadd.f32 0.0, %v627
  %v629 = vpop.f32.mrb[0].mxu0
  %v630 = vadd.f32 0.0, %v629
  %631 = vmatprep.mubr.f32.mxu0 0.0
  %632 = vmatmul.mubr.f32.gmra.mrb[0].mxu0 %v474
  %v633 = vpop.f32.mrb[0].mxu0
  %v634 = vadd.f32 0.0, %v633
  %v635 = vpop.f32.mrb[0].mxu0
  %v636 = vadd.f32 0.0, %v635
  %637 = vdwg.mxu0
  %v638 = vadd.f32 %v476, %v551
  %v639 = vadd.f32 %v477, %v553
  %v640 = vadd.f32 %v478, %v628
  %v641 = vadd.f32 %v479, %v630
  %v642 = vadd.f32 %v480, %v557
  %v643 = vadd.f32 %v481, %v559
  %v644 = vadd.f32 %v482, %v634
  %v645 = vadd.f32 %v483, %v636
  %v646 = vxor.u32 %v638, 2147483648
  %v647 = vxor.u32 %v642, 2147483648
  %v648 = vmul.f32 %v646, 1.442695
  %v649 = vpow.pop %v648
  %v650 = vmul.f32 %v647, 1.442695
  %v651 = vpow.pop %v650
  %v652 = vadd.f32 %v649, 1.0
  %v653 = vadd.f32 %v651, 1.0
  %v654 = vrcp.pop %v652
  %v655 = vmul.f32 1.0, %v654
  %v656 = vrcp.pop %v653
  %v657 = vmul.f32 1.0, %v656
  %v658 = vxor.u32 %v639, 2147483648
  %v659 = vxor.u32 %v643, 2147483648
  %v660 = vmul.f32 %v658, 1.442695
  %v661 = vpow.pop %v660
  %v662 = vmul.f32 %v659, 1.442695
  %v663 = vpow.pop %v662
  %v664 = vadd.f32 %v661, 1.0
  %v665 = vadd.f32 %v663, 1.0
  %v666 = vrcp.pop %v664
  %v667 = vmul.f32 1.0, %v666
  %v668 = vrcp.pop %v665
  %v669 = vmul.f32 1.0, %v668
  %v670 = vtanh.pop %v640
  %v671 = vtanh.pop %v644
  %v672 = vxor.u32 %v641, 2147483648
  %v673 = vxor.u32 %v645, 2147483648
  %v674 = vmul.f32 %v672, 1.442695
  %v675 = vpow.pop %v674
  %v676 = vmul.f32 %v673, 1.442695
  %v677 = vpow.pop %v676
  %v678 = vadd.f32 %v675, 1.0
  %v679 = vadd.f32 %v677, 1.0
  %v680 = vrcp.pop %v678
  %v681 = vmul.f32 1.0, %v680
  %v682 = vrcp.pop %v679
  %v683 = vmul.f32 1.0, %v682
  %v684 = vmul.f32 %v667, %v469
  %v685 = vmul.f32 %v669, %v470
  %v686 = vmul.f32 %v655, %v670
  %v687 = vmul.f32 %v657, %v671
  %v688 = vadd.f32 %v684, %v686
  %v689 = vadd.f32 %v685, %v687
  %v690 = vtanh.pop %v688
  %v691 = vtanh.pop %v689
  %v692 = vmul.f32 %v681, %v690
  %v693 = vmul.f32 %v683, %v691
  %s694 = scalar_lea.vmem %s0, 128
  %v695 = vld [vmem:[%s694] sm:$0xff]
  %v696 = vld [vmem:[%s694 + $0x8] sm:$0xff]
  %v697 = vld [vmem:[%s694 + $0x10] sm:$0xff]
  %v698 = vld [vmem:[%s694 + $0x18] sm:$0xff]
  %v699 = vld [vmem:[%s694 + $0x20] sm:$0xff]
  %v700 = vld [vmem:[%s694 + $0x28] sm:$0xff]
  %v701 = vld [vmem:[%s694 + $0x30] sm:$0xff]
  %v702 = vld [vmem:[%s694 + $0x38] sm:$0xff]
  %703 = vmatprep.subr.mxu0 %v190
  %704 = vmatpush1.msra.mxu0 %v189
  %705 = vmatprep.subr.mxu0 %v194
  %706 = vmatpush1.msra.mxu0 %v193
  %707 = vmatprep.subr.mxu0 %v198
  %708 = vmatpush1.msra.mxu0 %v197
  %709 = vmatprep.subr.mxu0 %v202
  %710 = vmatpush1.msra.mxu0 %v201
  %711 = vmatprep.subr.mxu0 %v206
  %712 = vmatpush1.msra.mxu0 %v205
  %713 = vmatprep.subr.mxu0 %v210
  %714 = vmatpush1.msra.mxu0 %v209
  %715 = vmatprep.subr.mxu0 %v214
  %716 = vmatpush1.msra.mxu0 %v213
  %717 = vmatprep.subr.mxu0 %v218
  %718 = vmatpush1.msra.mxu0 %v217
  %719 = vmatprep.subr.mxu0 %v222
  %720 = vmatpush1.msra.mxu0 %v221
  %721 = vmatprep.subr.mxu0 %v226
  %722 = vmatpush1.msra.mxu0 %v225
  %723 = vmatprep.subr.mxu0 %v230
  %724 = vmatpush1.msra.mxu0 %v229
  %725 = vmatprep.subr.mxu0 %v234
  %726 = vmatpush1.msra.mxu0 %v233
  %727 = vmatprep.subr.mxu0 %v238
  %728 = vmatpush1.msra.mxu0 %v237
  %729 = vmatprep.subr.mxu0 %v242
  %730 = vmatpush1.msra.mxu0 %v241
  %731 = vmatprep.subr.mxu0 %v246
  %732 = vmatpush1.msra.mxu0 %v245
  %733 = vmatprep.subr.mxu0 %v250
  %734 = vmatpush1.msra.mxu0 %v249
  %735 = vmatprep.subr.mxu0 0.0
  %736 = vmatpush1.msra.mxu0 0.0
  %737 = vmatprep.subr.mxu0 0.0
  %738 = vmatpush1.msra.mxu0 0.0
  %739 = vmatprep.subr.mxu0 0.0
  %740 = vmatpush1.msra.mxu0 0.0
  %741 = vmatprep.subr.mxu0 0.0
  %742 = vmatpush1.msra.mxu0 0.0
  %743 = vmatprep.subr.mxu0 0.0
  %744 = vmatpush1.msra.mxu0 0.0
  %745 = vmatprep.subr.mxu0 0.0
  %746 = vmatpush1.msra.mxu0 0.0
  %747 = vmatprep.subr.mxu0 0.0
  %748 = vmatpush1.msra.mxu0 0.0
  %749 = vmatprep.subr.mxu0 0.0
  %750 = vmatpush1.msra.mxu0 0.0
  %751 = vmatprep.subr.mxu0 0.0
  %752 = vmatpush1.msra.mxu0 0.0
  %753 = vmatprep.subr.mxu0 0.0
  %754 = vmatpush1.msra.mxu0 0.0
  %755 = vmatprep.subr.mxu0 0.0
  %756 = vmatpush1.msra.mxu0 0.0
  %757 = vmatprep.subr.mxu0 0.0
  %758 = vmatpush1.msra.mxu0 0.0
  %759 = vmatprep.subr.mxu0 0.0
  %760 = vmatpush1.msra.mxu0 0.0
  %761 = vmatprep.subr.mxu0 0.0
  %762 = vmatpush1.msra.mxu0 0.0
  %763 = vmatprep.subr.mxu0 0.0
  %764 = vmatpush1.msra.mxu0 0.0
  %765 = vmatprep.subr.mxu0 0.0
  %766 = vmatpush1.msra.mxu0 0.0
  %767 = vmatprep.mubr.f32.mxu0 0.0
  %768 = vmatmul.mubr.f32.gmra.mrb[0].mxu0 %v692
  %v769 = vpop.f32.mrb[0].mxu0
  %v770 = vadd.f32 0.0, %v769
  %v771 = vpop.f32.mrb[0].mxu0
  %v772 = vadd.f32 0.0, %v771
  %773 = vmatprep.mubr.f32.mxu0 0.0
  %774 = vmatmul.mubr.f32.gmra.mrb[0].mxu0 %v693
  %v775 = vpop.f32.mrb[0].mxu0
  %v776 = vadd.f32 0.0, %v775
  %v777 = vpop.f32.mrb[0].mxu0
  %v778 = vadd.f32 0.0, %v777
  %779 = vdwg.mxu0
  %780 = vmatprep.subr.mxu0 %v192
  %781 = vmatpush1.msra.mxu0 %v191
  %782 = vmatprep.subr.mxu0 %v196
  %783 = vmatpush1.msra.mxu0 %v195
  %784 = vmatprep.subr.mxu0 %v200
  %785 = vmatpush1.msra.mxu0 %v199
  %786 = vmatprep.subr.mxu0 %v204
  %787 = vmatpush1.msra.mxu0 %v203
  %788 = vmatprep.subr.mxu0 %v208
  %789 = vmatpush1.msra.mxu0 %v207
  %790 = vmatprep.subr.mxu0 %v212
  %791 = vmatpush1.msra.mxu0 %v211
  %792 = vmatprep.subr.mxu0 %v216
  %793 = vmatpush1.msra.mxu0 %v215
  %794 = vmatprep.subr.mxu0 %v220
  %795 = vmatpush1.msra.mxu0 %v219
  %796 = vmatprep.subr.mxu0 %v224
  %797 = vmatpush1.msra.mxu0 %v223
  %798 = vmatprep.subr.mxu0 %v228
  %799 = vmatpush1.msra.mxu0 %v227
  %800 = vmatprep.subr.mxu0 %v232
  %801 = vmatpush1.msra.mxu0 %v231
  %802 = vmatprep.subr.mxu0 %v236
  %803 = vmatpush1.msra.mxu0 %v235
  %804 = vmatprep.subr.mxu0 %v240
  %805 = vmatpush1.msra.mxu0 %v239
  %806 = vmatprep.subr.mxu0 %v244
  %807 = vmatpush1.msra.mxu0 %v243
  %808 = vmatprep.subr.mxu0 %v248
  %809 = vmatpush1.msra.mxu0 %v247
  %810 = vmatprep.subr.mxu0 %v252
  %811 = vmatpush1.msra.mxu0 %v251
  %812 = vmatprep.subr.mxu0 0.0
  %813 = vmatpush1.msra.mxu0 0.0
  %814 = vmatprep.subr.mxu0 0.0
  %815 = vmatpush1.msra.mxu0 0.0
  %816 = vmatprep.subr.mxu0 0.0
  %817 = vmatpush1.msra.mxu0 0.0
  %818 = vmatprep.subr.mxu0 0.0
  %819 = vmatpush1.msra.mxu0 0.0
  %820 = vmatprep.subr.mxu0 0.0
  %821 = vmatpush1.msra.mxu0 0.0
  %822 = vmatprep.subr.mxu0 0.0
  %823 = vmatpush1.msra.mxu0 0.0
  %824 = vmatprep.subr.mxu0 0.0
  %825 = vmatpush1.msra.mxu0 0.0
  %826 = vmatprep.subr.mxu0 0.0
  %827 = vmatpush1.msra.mxu0 0.0
  %828 = vmatprep.subr.mxu0 0.0
  %829 = vmatpush1.msra.mxu0 0.0
  %830 = vmatprep.subr.mxu0 0.0
  %831 = vmatpush1.msra.mxu0 0.0
  %832 = vmatprep.subr.mxu0 0.0
  %833 = vmatpush1.msra.mxu0 0.0
  %834 = vmatprep.subr.mxu0 0.0
  %835 = vmatpush1.msra.mxu0 0.0
  %836 = vmatprep.subr.mxu0 0.0
  %837 = vmatpush1.msra.mxu0 0.0
  %838 = vmatprep.subr.mxu0 0.0
  %839 = vmatpush1.msra.mxu0 0.0
  %840 = vmatprep.subr.mxu0 0.0
  %841 = vmatpush1.msra.mxu0 0.0
  %842 = vmatprep.subr.mxu0 0.0
  %843 = vmatpush1.msra.mxu0 0.0
  %844 = vmatprep.mubr.f32.mxu0 0.0
  %845 = vmatmul.mubr.f32.gmra.mrb[0].mxu0 %v692
  %v846 = vpop.f32.mrb[0].mxu0
  %v847 = vadd.f32 0.0, %v846
  %v848 = vpop.f32.mrb[0].mxu0
  %v849 = vadd.f32 0.0, %v848
  %850 = vmatprep.mubr.f32.mxu0 0.0
  %851 = vmatmul.mubr.f32.gmra.mrb[0].mxu0 %v693
  %v852 = vpop.f32.mrb[0].mxu0
  %v853 = vadd.f32 0.0, %v852
  %v854 = vpop.f32.mrb[0].mxu0
  %v855 = vadd.f32 0.0, %v854
  %856 = vdwg.mxu0
  %v857 = vadd.f32 %v695, %v770
  %v858 = vadd.f32 %v696, %v772
  %v859 = vadd.f32 %v697, %v847
  %v860 = vadd.f32 %v698, %v849
  %v861 = vadd.f32 %v699, %v776
  %v862 = vadd.f32 %v700, %v778
  %v863 = vadd.f32 %v701, %v853
  %v864 = vadd.f32 %v702, %v855
  %v865 = vxor.u32 %v857, 2147483648
  %v866 = vxor.u32 %v861, 2147483648
  %v867 = vmul.f32 %v865, 1.442695
  %v868 = vpow.pop %v867
  %v869 = vmul.f32 %v866, 1.442695
  %v870 = vpow.pop %v869
  %v871 = vadd.f32 %v868, 1.0
  %v872 = vadd.f32 %v870, 1.0
  %v873 = vrcp.pop %v871
  %v874 = vmul.f32 1.0, %v873
  %v875 = vrcp.pop %v872
  %v876 = vmul.f32 1.0, %v875
  %v877 = vxor.u32 %v858, 2147483648
  %v878 = vxor.u32 %v862, 2147483648
  %v879 = vmul.f32 %v877, 1.442695
  %v880 = vpow.pop %v879
  %v881 = vmul.f32 %v878, 1.442695
  %v882 = vpow.pop %v881
  %v883 = vadd.f32 %v880, 1.0
  %v884 = vadd.f32 %v882, 1.0
  %v885 = vrcp.pop %v883
  %v886 = vmul.f32 1.0, %v885
  %v887 = vrcp.pop %v884
  %v888 = vmul.f32 1.0, %v887
  %v889 = vtanh.pop %v859
  %v890 = vtanh.pop %v863
  %v891 = vxor.u32 %v860, 2147483648
  %v892 = vxor.u32 %v864, 2147483648
  %v893 = vmul.f32 %v891, 1.442695
  %v894 = vpow.pop %v893
  %v895 = vmul.f32 %v892, 1.442695
  %v896 = vpow.pop %v895
  %v897 = vadd.f32 %v894, 1.0
  %v898 = vadd.f32 %v896, 1.0
  %v899 = vrcp.pop %v897
  %v900 = vmul.f32 1.0, %v899
  %v901 = vrcp.pop %v898
  %v902 = vmul.f32 1.0, %v901
  %v903 = vmul.f32 %v886, %v688
  %v904 = vmul.f32 %v888, %v689
  %v905 = vmul.f32 %v874, %v889
  %v906 = vmul.f32 %v876, %v890
  %v907 = vadd.f32 %v903, %v905
  %v908 = vadd.f32 %v904, %v906
  %v909 = vtanh.pop %v907
  %v910 = vtanh.pop %v908
  %v911 = vmul.f32 %v900, %v909
  %v912 = vmul.f32 %v902, %v910
  %s913 = scalar_lea.vmem %s0, 192
  %v914 = vld [vmem:[%s913] sm:$0xff]
  %v915 = vld [vmem:[%s913 + $0x8] sm:$0xff]
  %v916 = vld [vmem:[%s913 + $0x10] sm:$0xff]
  %v917 = vld [vmem:[%s913 + $0x18] sm:$0xff]
  %v918 = vld [vmem:[%s913 + $0x20] sm:$0xff]
  %v919 = vld [vmem:[%s913 + $0x28] sm:$0xff]
  %v920 = vld [vmem:[%s913 + $0x30] sm:$0xff]
  %v921 = vld [vmem:[%s913 + $0x38] sm:$0xff]
  %922 = vmatprep.subr.mxu0 %v190
  %923 = vmatpush1.msra.mxu0 %v189
  %924 = vmatprep.subr.mxu0 %v194
  %925 = vmatpush1.msra.mxu0 %v193
  %926 = vmatprep.subr.mxu0 %v198
  %927 = vmatpush1.msra.mxu0 %v197
  %928 = vmatprep.subr.mxu0 %v202
  %929 = vmatpush1.msra.mxu0 %v201
  %930 = vmatprep.subr.mxu0 %v206
  %931 = vmatpush1.msra.mxu0 %v205
  %932 = vmatprep.subr.mxu0 %v210
  %933 = vmatpush1.msra.mxu0 %v209
  %934 = vmatprep.subr.mxu0 %v214
  %935 = vmatpush1.msra.mxu0 %v213
  %936 = vmatprep.subr.mxu0 %v218
  %937 = vmatpush1.msra.mxu0 %v217
  %938 = vmatprep.subr.mxu0 %v222
  %939 = vmatpush1.msra.mxu0 %v221
  %940 = vmatprep.subr.mxu0 %v226
  %941 = vmatpush1.msra.mxu0 %v225
  %942 = vmatprep.subr.mxu0 %v230
  %943 = vmatpush1.msra.mxu0 %v229
  %944 = vmatprep.subr.mxu0 %v234
  %945 = vmatpush1.msra.mxu0 %v233
  %946 = vmatprep.subr.mxu0 %v238
  %947 = vmatpush1.msra.mxu0 %v237
  %948 = vmatprep.subr.mxu0 %v242
  %949 = vmatpush1.msra.mxu0 %v241
  %950 = vmatprep.subr.mxu0 %v246
  %951 = vmatpush1.msra.mxu0 %v245
  %952 = vmatprep.subr.mxu0 %v250
  %953 = vmatpush1.msra.mxu0 %v249
  %954 = vmatprep.subr.mxu0 0.0
  %955 = vmatpush1.msra.mxu0 0.0
  %956 = vmatprep.subr.mxu0 0.0
  %957 = vmatpush1.msra.mxu0 0.0
  %958 = vmatprep.subr.mxu0 0.0
  %959 = vmatpush1.msra.mxu0 0.0
  %960 = vmatprep.subr.mxu0 0.0
  %961 = vmatpush1.msra.mxu0 0.0
  %962 = vmatprep.subr.mxu0 0.0
  %963 = vmatpush1.msra.mxu0 0.0
  %964 = vmatprep.subr.mxu0 0.0
  %965 = vmatpush1.msra.mxu0 0.0
  %966 = vmatprep.subr.mxu0 0.0
  %967 = vmatpush1.msra.mxu0 0.0
  %968 = vmatprep.subr.mxu0 0.0
  %969 = vmatpush1.msra.mxu0 0.0
  %970 = vmatprep.subr.mxu0 0.0
  %971 = vmatpush1.msra.mxu0 0.0
  %972 = vmatprep.subr.mxu0 0.0
  %973 = vmatpush1.msra.mxu0 0.0
  %974 = vmatprep.subr.mxu0 0.0
  %975 = vmatpush1.msra.mxu0 0.0
  %976 = vmatprep.subr.mxu0 0.0
  %977 = vmatpush1.msra.mxu0 0.0
  %978 = vmatprep.subr.mxu0 0.0
  %979 = vmatpush1.msra.mxu0 0.0
  %980 = vmatprep.subr.mxu0 0.0
  %981 = vmatpush1.msra.mxu0 0.0
  %982 = vmatprep.subr.mxu0 0.0
  %983 = vmatpush1.msra.mxu0 0.0
  %984 = vmatprep.subr.mxu0 0.0
  %985 = vmatpush1.msra.mxu0 0.0
  %986 = vmatprep.mubr.f32.mxu0 0.0
  %987 = vmatmul.mubr.f32.gmra.mrb[0].mxu0 %v911
  %v988 = vpop.f32.mrb[0].mxu0
  %v989 = vadd.f32 0.0, %v988
  %v990 = vpop.f32.mrb[0].mxu0
  %v991 = vadd.f32 0.0, %v990
  %992 = vmatprep.mubr.f32.mxu0 0.0
  %993 = vmatmul.mubr.f32.gmra.mrb[0].mxu0 %v912
  %v994 = vpop.f32.mrb[0].mxu0
  %v995 = vadd.f32 0.0, %v994
  %v996 = vpop.f32.mrb[0].mxu0
  %v997 = vadd.f32 0.0, %v996
  %998 = vdwg.mxu0
  %999 = vmatprep.subr.mxu0 %v192
  %1000 = vmatpush1.msra.mxu0 %v191
  %1001 = vmatprep.subr.mxu0 %v196
  %1002 = vmatpush1.msra.mxu0 %v195
  %1003 = vmatprep.subr.mxu0 %v200
  %1004 = vmatpush1.msra.mxu0 %v199
  %1005 = vmatprep.subr.mxu0 %v204
  %1006 = vmatpush1.msra.mxu0 %v203
  %1007 = vmatprep.subr.mxu0 %v208
  %1008 = vmatpush1.msra.mxu0 %v207
  %1009 = vmatprep.subr.mxu0 %v212
  %1010 = vmatpush1.msra.mxu0 %v211
  %1011 = vmatprep.subr.mxu0 %v216
  %1012 = vmatpush1.msra.mxu0 %v215
  %1013 = vmatprep.subr.mxu0 %v220
  %1014 = vmatpush1.msra.mxu0 %v219
  %1015 = vmatprep.subr.mxu0 %v224
  %1016 = vmatpush1.msra.mxu0 %v223
  %1017 = vmatprep.subr.mxu0 %v228
  %1018 = vmatpush1.msra.mxu0 %v227
  %1019 = vmatprep.subr.mxu0 %v232
  %1020 = vmatpush1.msra.mxu0 %v231
  %1021 = vmatprep.subr.mxu0 %v236
  %1022 = vmatpush1.msra.mxu0 %v235
  %1023 = vmatprep.subr.mxu0 %v240
  %1024 = vmatpush1.msra.mxu0 %v239
  %1025 = vmatprep.subr.mxu0 %v244
  %1026 = vmatpush1.msra.mxu0 %v243
  %1027 = vmatprep.subr.mxu0 %v248
  %1028 = vmatpush1.msra.mxu0 %v247
  %1029 = vmatprep.subr.mxu0 %v252
  %1030 = vmatpush1.msra.mxu0 %v251
  %1031 = vmatprep.subr.mxu0 0.0
  %1032 = vmatpush1.msra.mxu0 0.0
  %1033 = vmatprep.subr.mxu0 0.0
  %1034 = vmatpush1.msra.mxu0 0.0
  %1035 = vmatprep.subr.mxu0 0.0
  %1036 = vmatpush1.msra.mxu0 0.0
  %1037 = vmatprep.subr.mxu0 0.0
  %1038 = vmatpush1.msra.mxu0 0.0
  %1039 = vmatprep.subr.mxu0 0.0
  %1040 = vmatpush1.msra.mxu0 0.0
  %1041 = vmatprep.subr.mxu0 0.0
  %1042 = vmatpush1.msra.mxu0 0.0
  %1043 = vmatprep.subr.mxu0 0.0
  %1044 = vmatpush1.msra.mxu0 0.0
  %1045 = vmatprep.subr.mxu0 0.0
  %1046 = vmatpush1.msra.mxu0 0.0
  %1047 = vmatprep.subr.mxu0 0.0
  %1048 = vmatpush1.msra.mxu0 0.0
  %1049 = vmatprep.subr.mxu0 0.0
  %1050 = vmatpush1.msra.mxu0 0.0
  %1051 = vmatprep.subr.mxu0 0.0
  %1052 = vmatpush1.msra.mxu0 0.0
  %1053 = vmatprep.subr.mxu0 0.0
  %1054 = vmatpush1.msra.mxu0 0.0
  %1055 = vmatprep.subr.mxu0 0.0
  %1056 = vmatpush1.msra.mxu0 0.0
  %1057 = vmatprep.subr.mxu0 0.0
  %1058 = vmatpush1.msra.mxu0 0.0
  %1059 = vmatprep.subr.mxu0 0.0
  %1060 = vmatpush1.msra.mxu0 0.0
  %1061 = vmatprep.subr.mxu0 0.0
  %1062 = vmatpush1.msra.mxu0 0.0
  %1063 = vmatprep.mubr.f32.mxu0 0.0
  %1064 = vmatmul.mubr.f32.gmra.mrb[0].mxu0 %v911
  %v1065 = vpop.f32.mrb[0].mxu0
  %v1066 = vadd.f32 0.0, %v1065
  %v1067 = vpop.f32.mrb[0].mxu0
  %v1068 = vadd.f32 0.0, %v1067
  %1069 = vmatprep.mubr.f32.mxu0 0.0
  %1070 = vmatmul.mubr.f32.gmra.mrb[0].mxu0 %v912
  %v1071 = vpop.f32.mrb[0].mxu0
  %v1072 = vadd.f32 0.0, %v1071
  %v1073 = vpop.f32.mrb[0].mxu0
  %v1074 = vadd.f32 0.0, %v1073
  %1075 = vdwg.mxu0
  %v1076 = vadd.f32 %v914, %v989
  %v1077 = vadd.f32 %v915, %v991
  %v1078 = vadd.f32 %v916, %v1066
  %v1079 = vadd.f32 %v917, %v1068
  %v1080 = vadd.f32 %v918, %v995
  %v1081 = vadd.f32 %v919, %v997
  %v1082 = vadd.f32 %v920, %v1072
  %v1083 = vadd.f32 %v921, %v1074
  %v1084 = vxor.u32 %v1076, 2147483648
  %v1085 = vxor.u32 %v1080, 2147483648
  %v1086 = vmul.f32 %v1084, 1.442695
  %v1087 = vpow.pop %v1086
  %v1088 = vmul.f32 %v1085, 1.442695
  %v1089 = vpow.pop %v1088
  %v1090 = vadd.f32 %v1087, 1.0
  %v1091 = vadd.f32 %v1089, 1.0
  %v1092 = vrcp.pop %v1090
  %v1093 = vmul.f32 1.0, %v1092
  %v1094 = vrcp.pop %v1091
  %v1095 = vmul.f32 1.0, %v1094
  %v1096 = vxor.u32 %v1077, 2147483648
  %v1097 = vxor.u32 %v1081, 2147483648
  %v1098 = vmul.f32 %v1096, 1.442695
  %v1099 = vpow.pop %v1098
  %v1100 = vmul.f32 %v1097, 1.442695
  %v1101 = vpow.pop %v1100
  %v1102 = vadd.f32 %v1099, 1.0
  %v1103 = vadd.f32 %v1101, 1.0
  %v1104 = vrcp.pop %v1102
  %v1105 = vmul.f32 1.0, %v1104
  %v1106 = vrcp.pop %v1103
  %v1107 = vmul.f32 1.0, %v1106
  %v1108 = vtanh.pop %v1078
  %v1109 = vtanh.pop %v1082
  %v1110 = vxor.u32 %v1079, 2147483648
  %v1111 = vxor.u32 %v1083, 2147483648
  %v1112 = vmul.f32 %v1110, 1.442695
  %v1113 = vpow.pop %v1112
  %v1114 = vmul.f32 %v1111, 1.442695
  %v1115 = vpow.pop %v1114
  %v1116 = vadd.f32 %v1113, 1.0
  %v1117 = vadd.f32 %v1115, 1.0
  %v1118 = vrcp.pop %v1116
  %v1119 = vmul.f32 1.0, %v1118
  %v1120 = vrcp.pop %v1117
  %v1121 = vmul.f32 1.0, %v1120
  %v1122 = vmul.f32 %v1105, %v907
  %v1123 = vmul.f32 %v1107, %v908
  %v1124 = vmul.f32 %v1093, %v1108
  %v1125 = vmul.f32 %v1095, %v1109
  %v1126 = vadd.f32 %v1122, %v1124
  %v1127 = vadd.f32 %v1123, %v1125
  %v1128 = vtanh.pop %v1126
  %v1129 = vtanh.pop %v1127
  %v1130 = vmul.f32 %v1119, %v1128
  %v1131 = vmul.f32 %v1121, %v1129
  %s1132 = scalar_lea.vmem %s0, 256
  %v1133 = vld [vmem:[%s1132] sm:$0xff]
  %v1134 = vld [vmem:[%s1132 + $0x8] sm:$0xff]
  %v1135 = vld [vmem:[%s1132 + $0x10] sm:$0xff]
  %v1136 = vld [vmem:[%s1132 + $0x18] sm:$0xff]
  %v1137 = vld [vmem:[%s1132 + $0x20] sm:$0xff]
  %v1138 = vld [vmem:[%s1132 + $0x28] sm:$0xff]
  %v1139 = vld [vmem:[%s1132 + $0x30] sm:$0xff]
  %v1140 = vld [vmem:[%s1132 + $0x38] sm:$0xff]
  %1141 = vmatprep.subr.mxu0 %v190
  %1142 = vmatpush1.msra.mxu0 %v189
  %1143 = vmatprep.subr.mxu0 %v194
  %1144 = vmatpush1.msra.mxu0 %v193
  %1145 = vmatprep.subr.mxu0 %v198
  %1146 = vmatpush1.msra.mxu0 %v197
  %1147 = vmatprep.subr.mxu0 %v202
  %1148 = vmatpush1.msra.mxu0 %v201
  %1149 = vmatprep.subr.mxu0 %v206
  %1150 = vmatpush1.msra.mxu0 %v205
  %1151 = vmatprep.subr.mxu0 %v210
  %1152 = vmatpush1.msra.mxu0 %v209
  %1153 = vmatprep.subr.mxu0 %v214
  %1154 = vmatpush1.msra.mxu0 %v213
  %1155 = vmatprep.subr.mxu0 %v218
  %1156 = vmatpush1.msra.mxu0 %v217
  %1157 = vmatprep.subr.mxu0 %v222
  %1158 = vmatpush1.msra.mxu0 %v221
  %1159 = vmatprep.subr.mxu0 %v226
  %1160 = vmatpush1.msra.mxu0 %v225
  %1161 = vmatprep.subr.mxu0 %v230
  %1162 = vmatpush1.msra.mxu0 %v229
  %1163 = vmatprep.subr.mxu0 %v234
  %1164 = vmatpush1.msra.mxu0 %v233
  %1165 = vmatprep.subr.mxu0 %v238
  %1166 = vmatpush1.msra.mxu0 %v237
  %1167 = vmatprep.subr.mxu0 %v242
  %1168 = vmatpush1.msra.mxu0 %v241
  %1169 = vmatprep.subr.mxu0 %v246
  %1170 = vmatpush1.msra.mxu0 %v245
  %1171 = vmatprep.subr.mxu0 %v250
  %1172 = vmatpush1.msra.mxu0 %v249
  %1173 = vmatprep.subr.mxu0 0.0
  %1174 = vmatpush1.msra.mxu0 0.0
  %1175 = vmatprep.subr.mxu0 0.0
  %1176 = vmatpush1.msra.mxu0 0.0
  %1177 = vmatprep.subr.mxu0 0.0
  %1178 = vmatpush1.msra.mxu0 0.0
  %1179 = vmatprep.subr.mxu0 0.0
  %1180 = vmatpush1.msra.mxu0 0.0
  %1181 = vmatprep.subr.mxu0 0.0
  %1182 = vmatpush1.msra.mxu0 0.0
  %1183 = vmatprep.subr.mxu0 0.0
  %1184 = vmatpush1.msra.mxu0 0.0
  %1185 = vmatprep.subr.mxu0 0.0
  %1186 = vmatpush1.msra.mxu0 0.0
  %1187 = vmatprep.subr.mxu0 0.0
  %1188 = vmatpush1.msra.mxu0 0.0
  %1189 = vmatprep.subr.mxu0 0.0
  %1190 = vmatpush1.msra.mxu0 0.0
  %1191 = vmatprep.subr.mxu0 0.0
  %1192 = vmatpush1.msra.mxu0 0.0
  %1193 = vmatprep.subr.mxu0 0.0
  %1194 = vmatpush1.msra.mxu0 0.0
  %1195 = vmatprep.subr.mxu0 0.0
  %1196 = vmatpush1.msra.mxu0 0.0
  %1197 = vmatprep.subr.mxu0 0.0
  %1198 = vmatpush1.msra.mxu0 0.0
  %1199 = vmatprep.subr.mxu0 0.0
  %1200 = vmatpush1.msra.mxu0 0.0
  %1201 = vmatprep.subr.mxu0 0.0
  %1202 = vmatpush1.msra.mxu0 0.0
  %1203 = vmatprep.subr.mxu0 0.0
  %1204 = vmatpush1.msra.mxu0 0.0
  %1205 = vmatprep.mubr.f32.mxu0 0.0
  %1206 = vmatmul.mubr.f32.gmra.mrb[0].mxu0 %v1130
  %v1207 = vpop.f32.mrb[0].mxu0
  %v1208 = vadd.f32 0.0, %v1207
  %v1209 = vpop.f32.mrb[0].mxu0
  %v1210 = vadd.f32 0.0, %v1209
  %1211 = vmatprep.mubr.f32.mxu0 0.0
  %1212 = vmatmul.mubr.f32.gmra.mrb[0].mxu0 %v1131
  %v1213 = vpop.f32.mrb[0].mxu0
  %v1214 = vadd.f32 0.0, %v1213
  %v1215 = vpop.f32.mrb[0].mxu0
  %v1216 = vadd.f32 0.0, %v1215
  %1217 = vdwg.mxu0
  %1218 = vmatprep.subr.mxu0 %v192
  %1219 = vmatpush1.msra.mxu0 %v191
  %1220 = vmatprep.subr.mxu0 %v196
  %1221 = vmatpush1.msra.mxu0 %v195
  %1222 = vmatprep.subr.mxu0 %v200
  %1223 = vmatpush1.msra.mxu0 %v199
  %1224 = vmatprep.subr.mxu0 %v204
  %1225 = vmatpush1.msra.mxu0 %v203
  %1226 = vmatprep.subr.mxu0 %v208
  %1227 = vmatpush1.msra.mxu0 %v207
  %1228 = vmatprep.subr.mxu0 %v212
  %1229 = vmatpush1.msra.mxu0 %v211
  %1230 = vmatprep.subr.mxu0 %v216
  %1231 = vmatpush1.msra.mxu0 %v215
  %1232 = vmatprep.subr.mxu0 %v220
  %1233 = vmatpush1.msra.mxu0 %v219
  %1234 = vmatprep.subr.mxu0 %v224
  %1235 = vmatpush1.msra.mxu0 %v223
  %1236 = vmatprep.subr.mxu0 %v228
  %1237 = vmatpush1.msra.mxu0 %v227
  %1238 = vmatprep.subr.mxu0 %v232
  %1239 = vmatpush1.msra.mxu0 %v231
  %1240 = vmatprep.subr.mxu0 %v236
  %1241 = vmatpush1.msra.mxu0 %v235
  %1242 = vmatprep.subr.mxu0 %v240
  %1243 = vmatpush1.msra.mxu0 %v239
  %1244 = vmatprep.subr.mxu0 %v244
  %1245 = vmatpush1.msra.mxu0 %v243
  %1246 = vmatprep.subr.mxu0 %v248
  %1247 = vmatpush1.msra.mxu0 %v247
  %1248 = vmatprep.subr.mxu0 %v252
  %1249 = vmatpush1.msra.mxu0 %v251
  %1250 = vmatprep.subr.mxu0 0.0
  %1251 = vmatpush1.msra.mxu0 0.0
  %1252 = vmatprep.subr.mxu0 0.0
  %1253 = vmatpush1.msra.mxu0 0.0
  %1254 = vmatprep.subr.mxu0 0.0
  %1255 = vmatpush1.msra.mxu0 0.0
  %1256 = vmatprep.subr.mxu0 0.0
  %1257 = vmatpush1.msra.mxu0 0.0
  %1258 = vmatprep.subr.mxu0 0.0
  %1259 = vmatpush1.msra.mxu0 0.0
  %1260 = vmatprep.subr.mxu0 0.0
  %1261 = vmatpush1.msra.mxu0 0.0
  %1262 = vmatprep.subr.mxu0 0.0
  %1263 = vmatpush1.msra.mxu0 0.0
  %1264 = vmatprep.subr.mxu0 0.0
  %1265 = vmatpush1.msra.mxu0 0.0
  %1266 = vmatprep.subr.mxu0 0.0
  %1267 = vmatpush1.msra.mxu0 0.0
  %1268 = vmatprep.subr.mxu0 0.0
  %1269 = vmatpush1.msra.mxu0 0.0
  %1270 = vmatprep.subr.mxu0 0.0
  %1271 = vmatpush1.msra.mxu0 0.0
  %1272 = vmatprep.subr.mxu0 0.0
  %1273 = vmatpush1.msra.mxu0 0.0
  %1274 = vmatprep.subr.mxu0 0.0
  %1275 = vmatpush1.msra.mxu0 0.0
  %1276 = vmatprep.subr.mxu0 0.0
  %1277 = vmatpush1.msra.mxu0 0.0
  %1278 = vmatprep.subr.mxu0 0.0
  %1279 = vmatpush1.msra.mxu0 0.0
  %1280 = vmatprep.subr.mxu0 0.0
  %1281 = vmatpush1.msra.mxu0 0.0
  %1282 = vmatprep.mubr.f32.mxu0 0.0
  %1283 = vmatmul.mubr.f32.gmra.mrb[0].mxu0 %v1130
  %v1284 = vpop.f32.mrb[0].mxu0
  %v1285 = vadd.f32 0.0, %v1284
  %v1286 = vpop.f32.mrb[0].mxu0
  %v1287 = vadd.f32 0.0, %v1286
  %1288 = vmatprep.mubr.f32.mxu0 0.0
  %1289 = vmatmul.mubr.f32.gmra.mrb[0].mxu0 %v1131
  %v1290 = vpop.f32.mrb[0].mxu0
  %v1291 = vadd.f32 0.0, %v1290
  %v1292 = vpop.f32.mrb[0].mxu0
  %v1293 = vadd.f32 0.0, %v1292
  %1294 = vdwg.mxu0
  %v1295 = vadd.f32 %v1133, %v1208
  %v1296 = vadd.f32 %v1134, %v1210
  %v1297 = vadd.f32 %v1135, %v1285
  %v1298 = vadd.f32 %v1136, %v1287
  %v1299 = vadd.f32 %v1137, %v1214
  %v1300 = vadd.f32 %v1138, %v1216
  %v1301 = vadd.f32 %v1139, %v1291
  %v1302 = vadd.f32 %v1140, %v1293
  %v1303 = vxor.u32 %v1295, 2147483648
  %v1304 = vxor.u32 %v1299, 2147483648
  %v1305 = vmul.f32 %v1303, 1.442695
  %v1306 = vpow.pop %v1305
  %v1307 = vmul.f32 %v1304, 1.442695
  %v1308 = vpow.pop %v1307
  %v1309 = vadd.f32 %v1306, 1.0
  %v1310 = vadd.f32 %v1308, 1.0
  %v1311 = vrcp.pop %v1309
  %v1312 = vmul.f32 1.0, %v1311
  %v1313 = vrcp.pop %v1310
  %v1314 = vmul.f32 1.0, %v1313
  %v1315 = vxor.u32 %v1296, 2147483648
  %v1316 = vxor.u32 %v1300, 2147483648
  %v1317 = vmul.f32 %v1315, 1.442695
  %v1318 = vpow.pop %v1317
  %v1319 = vmul.f32 %v1316, 1.442695
  %v1320 = vpow.pop %v1319
  %v1321 = vadd.f32 %v1318, 1.0
  %v1322 = vadd.f32 %v1320, 1.0
  %v1323 = vrcp.pop %v1321
  %v1324 = vmul.f32 1.0, %v1323
  %v1325 = vrcp.pop %v1322
  %v1326 = vmul.f32 1.0, %v1325
  %v1327 = vtanh.pop %v1297
  %v1328 = vtanh.pop %v1301
  %v1329 = vxor.u32 %v1298, 2147483648
  %v1330 = vxor.u32 %v1302, 2147483648
  %v1331 = vmul.f32 %v1329, 1.442695
  %v1332 = vpow.pop %v1331
  %v1333 = vmul.f32 %v1330, 1.442695
  %v1334 = vpow.pop %v1333
  %v1335 = vadd.f32 %v1332, 1.0
  %v1336 = vadd.f32 %v1334, 1.0
  %v1337 = vrcp.pop %v1335
  %v1338 = vmul.f32 1.0, %v1337
  %v1339 = vrcp.pop %v1336
  %v1340 = vmul.f32 1.0, %v1339
  %v1341 = vmul.f32 %v1324, %v1126
  %v1342 = vmul.f32 %v1326, %v1127
  %v1343 = vmul.f32 %v1312, %v1327
  %v1344 = vmul.f32 %v1314, %v1328
  %v1345 = vadd.f32 %v1341, %v1343
  %v1346 = vadd.f32 %v1342, %v1344
  %v1347 = vtanh.pop %v1345
  %v1348 = vtanh.pop %v1346
  %v1349 = vmul.f32 %v1338, %v1347
  %v1350 = vmul.f32 %v1340, %v1348
  %s1351 = scalar_lea.vmem %s0, 320
  %v1352 = vld [vmem:[%s1351] sm:$0xff]
  %v1353 = vld [vmem:[%s1351 + $0x8] sm:$0xff]
  %v1354 = vld [vmem:[%s1351 + $0x10] sm:$0xff]
  %v1355 = vld [vmem:[%s1351 + $0x18] sm:$0xff]
  %v1356 = vld [vmem:[%s1351 + $0x20] sm:$0xff]
  %v1357 = vld [vmem:[%s1351 + $0x28] sm:$0xff]
  %v1358 = vld [vmem:[%s1351 + $0x30] sm:$0xff]
  %v1359 = vld [vmem:[%s1351 + $0x38] sm:$0xff]
  %1360 = vmatprep.subr.mxu0 %v190
  %1361 = vmatpush1.msra.mxu0 %v189
  %1362 = vmatprep.subr.mxu0 %v194
  %1363 = vmatpush1.msra.mxu0 %v193
  %1364 = vmatprep.subr.mxu0 %v198
  %1365 = vmatpush1.msra.mxu0 %v197
  %1366 = vmatprep.subr.mxu0 %v202
  %1367 = vmatpush1.msra.mxu0 %v201
  %1368 = vmatprep.subr.mxu0 %v206
  %1369 = vmatpush1.msra.mxu0 %v205
  %1370 = vmatprep.subr.mxu0 %v210
  %1371 = vmatpush1.msra.mxu0 %v209
  %1372 = vmatprep.subr.mxu0 %v214
  %1373 = vmatpush1.msra.mxu0 %v213
  %1374 = vmatprep.subr.mxu0 %v218
  %1375 = vmatpush1.msra.mxu0 %v217
  %1376 = vmatprep.subr.mxu0 %v222
  %1377 = vmatpush1.msra.mxu0 %v221
  %1378 = vmatprep.subr.mxu0 %v226
  %1379 = vmatpush1.msra.mxu0 %v225
  %1380 = vmatprep.subr.mxu0 %v230
  %1381 = vmatpush1.msra.mxu0 %v229
  %1382 = vmatprep.subr.mxu0 %v234
  %1383 = vmatpush1.msra.mxu0 %v233
  %1384 = vmatprep.subr.mxu0 %v238
  %1385 = vmatpush1.msra.mxu0 %v237
  %1386 = vmatprep.subr.mxu0 %v242
  %1387 = vmatpush1.msra.mxu0 %v241
  %1388 = vmatprep.subr.mxu0 %v246
  %1389 = vmatpush1.msra.mxu0 %v245
  %1390 = vmatprep.subr.mxu0 %v250
  %1391 = vmatpush1.msra.mxu0 %v249
  %1392 = vmatprep.subr.mxu0 0.0
  %1393 = vmatpush1.msra.mxu0 0.0
  %1394 = vmatprep.subr.mxu0 0.0
  %1395 = vmatpush1.msra.mxu0 0.0
  %1396 = vmatprep.subr.mxu0 0.0
  %1397 = vmatpush1.msra.mxu0 0.0
  %1398 = vmatprep.subr.mxu0 0.0
  %1399 = vmatpush1.msra.mxu0 0.0
  %1400 = vmatprep.subr.mxu0 0.0
  %1401 = vmatpush1.msra.mxu0 0.0
  %1402 = vmatprep.subr.mxu0 0.0
  %1403 = vmatpush1.msra.mxu0 0.0
  %1404 = vmatprep.subr.mxu0 0.0
  %1405 = vmatpush1.msra.mxu0 0.0
  %1406 = vmatprep.subr.mxu0 0.0
  %1407 = vmatpush1.msra.mxu0 0.0
  %1408 = vmatprep.subr.mxu0 0.0
  %1409 = vmatpush1.msra.mxu0 0.0
  %1410 = vmatprep.subr.mxu0 0.0
  %1411 = vmatpush1.msra.mxu0 0.0
  %1412 = vmatprep.subr.mxu0 0.0
  %1413 = vmatpush1.msra.mxu0 0.0
  %1414 = vmatprep.subr.mxu0 0.0
  %1415 = vmatpush1.msra.mxu0 0.0
  %1416 = vmatprep.subr.mxu0 0.0
  %1417 = vmatpush1.msra.mxu0 0.0
  %1418 = vmatprep.subr.mxu0 0.0
  %1419 = vmatpush1.msra.mxu0 0.0
  %1420 = vmatprep.subr.mxu0 0.0
  %1421 = vmatpush1.msra.mxu0 0.0
  %1422 = vmatprep.subr.mxu0 0.0
  %1423 = vmatpush1.msra.mxu0 0.0
  %1424 = vmatprep.mubr.f32.mxu0 0.0
  %1425 = vmatmul.mubr.f32.gmra.mrb[0].mxu0 %v1349
  %v1426 = vpop.f32.mrb[0].mxu0
  %v1427 = vadd.f32 0.0, %v1426
  %v1428 = vpop.f32.mrb[0].mxu0
  %v1429 = vadd.f32 0.0, %v1428
  %1430 = vmatprep.mubr.f32.mxu0 0.0
  %1431 = vmatmul.mubr.f32.gmra.mrb[0].mxu0 %v1350
  %v1432 = vpop.f32.mrb[0].mxu0
  %v1433 = vadd.f32 0.0, %v1432
  %v1434 = vpop.f32.mrb[0].mxu0
  %v1435 = vadd.f32 0.0, %v1434
  %1436 = vdwg.mxu0
  %1437 = vmatprep.subr.mxu0 %v192
  %1438 = vmatpush1.msra.mxu0 %v191
  %1439 = vmatprep.subr.mxu0 %v196
  %1440 = vmatpush1.msra.mxu0 %v195
  %1441 = vmatprep.subr.mxu0 %v200
  %1442 = vmatpush1.msra.mxu0 %v199
  %1443 = vmatprep.subr.mxu0 %v204
  %1444 = vmatpush1.msra.mxu0 %v203
  %1445 = vmatprep.subr.mxu0 %v208
  %1446 = vmatpush1.msra.mxu0 %v207
  %1447 = vmatprep.subr.mxu0 %v212
  %1448 = vmatpush1.msra.mxu0 %v211
  %1449 = vmatprep.subr.mxu0 %v216
  %1450 = vmatpush1.msra.mxu0 %v215
  %1451 = vmatprep.subr.mxu0 %v220
  %1452 = vmatpush1.msra.mxu0 %v219
  %1453 = vmatprep.subr.mxu0 %v224
  %1454 = vmatpush1.msra.mxu0 %v223
  %1455 = vmatprep.subr.mxu0 %v228
  %1456 = vmatpush1.msra.mxu0 %v227
  %1457 = vmatprep.subr.mxu0 %v232
  %1458 = vmatpush1.msra.mxu0 %v231
  %1459 = vmatprep.subr.mxu0 %v236
  %1460 = vmatpush1.msra.mxu0 %v235
  %1461 = vmatprep.subr.mxu0 %v240
  %1462 = vmatpush1.msra.mxu0 %v239
  %1463 = vmatprep.subr.mxu0 %v244
  %1464 = vmatpush1.msra.mxu0 %v243
  %1465 = vmatprep.subr.mxu0 %v248
  %1466 = vmatpush1.msra.mxu0 %v247
  %1467 = vmatprep.subr.mxu0 %v252
  %1468 = vmatpush1.msra.mxu0 %v251
  %1469 = vmatprep.subr.mxu0 0.0
  %1470 = vmatpush1.msra.mxu0 0.0
  %1471 = vmatprep.subr.mxu0 0.0
  %1472 = vmatpush1.msra.mxu0 0.0
  %1473 = vmatprep.subr.mxu0 0.0
  %1474 = vmatpush1.msra.mxu0 0.0
  %1475 = vmatprep.subr.mxu0 0.0
  %1476 = vmatpush1.msra.mxu0 0.0
  %1477 = vmatprep.subr.mxu0 0.0
  %1478 = vmatpush1.msra.mxu0 0.0
  %1479 = vmatprep.subr.mxu0 0.0
  %1480 = vmatpush1.msra.mxu0 0.0
  %1481 = vmatprep.subr.mxu0 0.0
  %1482 = vmatpush1.msra.mxu0 0.0
  %1483 = vmatprep.subr.mxu0 0.0
  %1484 = vmatpush1.msra.mxu0 0.0
  %1485 = vmatprep.subr.mxu0 0.0
  %1486 = vmatpush1.msra.mxu0 0.0
  %1487 = vmatprep.subr.mxu0 0.0
  %1488 = vmatpush1.msra.mxu0 0.0
  %1489 = vmatprep.subr.mxu0 0.0
  %1490 = vmatpush1.msra.mxu0 0.0
  %1491 = vmatprep.subr.mxu0 0.0
  %1492 = vmatpush1.msra.mxu0 0.0
  %1493 = vmatprep.subr.mxu0 0.0
  %1494 = vmatpush1.msra.mxu0 0.0
  %1495 = vmatprep.subr.mxu0 0.0
  %1496 = vmatpush1.msra.mxu0 0.0
  %1497 = vmatprep.subr.mxu0 0.0
  %1498 = vmatpush1.msra.mxu0 0.0
  %1499 = vmatprep.subr.mxu0 0.0
  %1500 = vmatpush1.msra.mxu0 0.0
  %1501 = vmatprep.mubr.f32.mxu0 0.0
  %1502 = vmatmul.mubr.f32.gmra.mrb[0].mxu0 %v1349
  %v1503 = vpop.f32.mrb[0].mxu0
  %v1504 = vadd.f32 0.0, %v1503
  %v1505 = vpop.f32.mrb[0].mxu0
  %v1506 = vadd.f32 0.0, %v1505
  %1507 = vmatprep.mubr.f32.mxu0 0.0
  %1508 = vmatmul.mubr.f32.gmra.mrb[0].mxu0 %v1350
  %v1509 = vpop.f32.mrb[0].mxu0
  %v1510 = vadd.f32 0.0, %v1509
  %v1511 = vpop.f32.mrb[0].mxu0
  %v1512 = vadd.f32 0.0, %v1511
  %1513 = vdwg.mxu0
  %v1514 = vadd.f32 %v1352, %v1427
  %v1515 = vadd.f32 %v1353, %v1429
  %v1516 = vadd.f32 %v1354, %v1504
  %v1517 = vadd.f32 %v1355, %v1506
  %v1518 = vadd.f32 %v1356, %v1433
  %v1519 = vadd.f32 %v1357, %v1435
  %v1520 = vadd.f32 %v1358, %v1510
  %v1521 = vadd.f32 %v1359, %v1512
  %v1522 = vxor.u32 %v1514, 2147483648
  %v1523 = vxor.u32 %v1518, 2147483648
  %v1524 = vmul.f32 %v1522, 1.442695
  %v1525 = vpow.pop %v1524
  %v1526 = vmul.f32 %v1523, 1.442695
  %v1527 = vpow.pop %v1526
  %v1528 = vadd.f32 %v1525, 1.0
  %v1529 = vadd.f32 %v1527, 1.0
  %v1530 = vrcp.pop %v1528
  %v1531 = vmul.f32 1.0, %v1530
  %v1532 = vrcp.pop %v1529
  %v1533 = vmul.f32 1.0, %v1532
  %v1534 = vxor.u32 %v1515, 2147483648
  %v1535 = vxor.u32 %v1519, 2147483648
  %v1536 = vmul.f32 %v1534, 1.442695
  %v1537 = vpow.pop %v1536
  %v1538 = vmul.f32 %v1535, 1.442695
  %v1539 = vpow.pop %v1538
  %v1540 = vadd.f32 %v1537, 1.0
  %v1541 = vadd.f32 %v1539, 1.0
  %v1542 = vrcp.pop %v1540
  %v1543 = vmul.f32 1.0, %v1542
  %v1544 = vrcp.pop %v1541
  %v1545 = vmul.f32 1.0, %v1544
  %v1546 = vtanh.pop %v1516
  %v1547 = vtanh.pop %v1520
  %v1548 = vxor.u32 %v1517, 2147483648
  %v1549 = vxor.u32 %v1521, 2147483648
  %v1550 = vmul.f32 %v1548, 1.442695
  %v1551 = vpow.pop %v1550
  %v1552 = vmul.f32 %v1549, 1.442695
  %v1553 = vpow.pop %v1552
  %v1554 = vadd.f32 %v1551, 1.0
  %v1555 = vadd.f32 %v1553, 1.0
  %v1556 = vrcp.pop %v1554
  %v1557 = vmul.f32 1.0, %v1556
  %v1558 = vrcp.pop %v1555
  %v1559 = vmul.f32 1.0, %v1558
  %v1560 = vmul.f32 %v1543, %v1345
  %v1561 = vmul.f32 %v1545, %v1346
  %v1562 = vmul.f32 %v1531, %v1546
  %v1563 = vmul.f32 %v1533, %v1547
  %v1564 = vadd.f32 %v1560, %v1562
  %v1565 = vadd.f32 %v1561, %v1563
  %v1566 = vtanh.pop %v1564
  %v1567 = vtanh.pop %v1565
  %v1568 = vmul.f32 %v1557, %v1566
  %v1569 = vmul.f32 %v1559, %v1567
  %s1570 = scalar_lea.vmem %s0, 384
  %v1571 = vld [vmem:[%s1570] sm:$0xff]
  %v1572 = vld [vmem:[%s1570 + $0x8] sm:$0xff]
  %v1573 = vld [vmem:[%s1570 + $0x10] sm:$0xff]
  %v1574 = vld [vmem:[%s1570 + $0x18] sm:$0xff]
  %v1575 = vld [vmem:[%s1570 + $0x20] sm:$0xff]
  %v1576 = vld [vmem:[%s1570 + $0x28] sm:$0xff]
  %v1577 = vld [vmem:[%s1570 + $0x30] sm:$0xff]
  %v1578 = vld [vmem:[%s1570 + $0x38] sm:$0xff]
  %1579 = vmatprep.subr.mxu0 %v190
  %1580 = vmatpush1.msra.mxu0 %v189
  %1581 = vmatprep.subr.mxu0 %v194
  %1582 = vmatpush1.msra.mxu0 %v193
  %1583 = vmatprep.subr.mxu0 %v198
  %1584 = vmatpush1.msra.mxu0 %v197
  %1585 = vmatprep.subr.mxu0 %v202
  %1586 = vmatpush1.msra.mxu0 %v201
  %1587 = vmatprep.subr.mxu0 %v206
  %1588 = vmatpush1.msra.mxu0 %v205
  %1589 = vmatprep.subr.mxu0 %v210
  %1590 = vmatpush1.msra.mxu0 %v209
  %1591 = vmatprep.subr.mxu0 %v214
  %1592 = vmatpush1.msra.mxu0 %v213
  %1593 = vmatprep.subr.mxu0 %v218
  %1594 = vmatpush1.msra.mxu0 %v217
  %1595 = vmatprep.subr.mxu0 %v222
  %1596 = vmatpush1.msra.mxu0 %v221
  %1597 = vmatprep.subr.mxu0 %v226
  %1598 = vmatpush1.msra.mxu0 %v225
  %1599 = vmatprep.subr.mxu0 %v230
  %1600 = vmatpush1.msra.mxu0 %v229
  %1601 = vmatprep.subr.mxu0 %v234
  %1602 = vmatpush1.msra.mxu0 %v233
  %1603 = vmatprep.subr.mxu0 %v238
  %1604 = vmatpush1.msra.mxu0 %v237
  %1605 = vmatprep.subr.mxu0 %v242
  %1606 = vmatpush1.msra.mxu0 %v241
  %1607 = vmatprep.subr.mxu0 %v246
  %1608 = vmatpush1.msra.mxu0 %v245
  %1609 = vmatprep.subr.mxu0 %v250
  %1610 = vmatpush1.msra.mxu0 %v249
  %1611 = vmatprep.subr.mxu0 0.0
  %1612 = vmatpush1.msra.mxu0 0.0
  %1613 = vmatprep.subr.mxu0 0.0
  %1614 = vmatpush1.msra.mxu0 0.0
  %1615 = vmatprep.subr.mxu0 0.0
  %1616 = vmatpush1.msra.mxu0 0.0
  %1617 = vmatprep.subr.mxu0 0.0
  %1618 = vmatpush1.msra.mxu0 0.0
  %1619 = vmatprep.subr.mxu0 0.0
  %1620 = vmatpush1.msra.mxu0 0.0
  %1621 = vmatprep.subr.mxu0 0.0
  %1622 = vmatpush1.msra.mxu0 0.0
  %1623 = vmatprep.subr.mxu0 0.0
  %1624 = vmatpush1.msra.mxu0 0.0
  %1625 = vmatprep.subr.mxu0 0.0
  %1626 = vmatpush1.msra.mxu0 0.0
  %1627 = vmatprep.subr.mxu0 0.0
  %1628 = vmatpush1.msra.mxu0 0.0
  %1629 = vmatprep.subr.mxu0 0.0
  %1630 = vmatpush1.msra.mxu0 0.0
  %1631 = vmatprep.subr.mxu0 0.0
  %1632 = vmatpush1.msra.mxu0 0.0
  %1633 = vmatprep.subr.mxu0 0.0
  %1634 = vmatpush1.msra.mxu0 0.0
  %1635 = vmatprep.subr.mxu0 0.0
  %1636 = vmatpush1.msra.mxu0 0.0
  %1637 = vmatprep.subr.mxu0 0.0
  %1638 = vmatpush1.msra.mxu0 0.0
  %1639 = vmatprep.subr.mxu0 0.0
  %1640 = vmatpush1.msra.mxu0 0.0
  %1641 = vmatprep.subr.mxu0 0.0
  %1642 = vmatpush1.msra.mxu0 0.0
  %1643 = vmatprep.mubr.f32.mxu0 0.0
  %1644 = vmatmul.mubr.f32.gmra.mrb[0].mxu0 %v1568
  %v1645 = vpop.f32.mrb[0].mxu0
  %v1646 = vadd.f32 0.0, %v1645
  %v1647 = vpop.f32.mrb[0].mxu0
  %v1648 = vadd.f32 0.0, %v1647
  %1649 = vmatprep.mubr.f32.mxu0 0.0
  %1650 = vmatmul.mubr.f32.gmra.mrb[0].mxu0 %v1569
  %v1651 = vpop.f32.mrb[0].mxu0
  %v1652 = vadd.f32 0.0, %v1651
  %v1653 = vpop.f32.mrb[0].mxu0
  %v1654 = vadd.f32 0.0, %v1653
  %1655 = vdwg.mxu0
  %1656 = vmatprep.subr.mxu0 %v192
  %1657 = vmatpush1.msra.mxu0 %v191
  %1658 = vmatprep.subr.mxu0 %v196
  %1659 = vmatpush1.msra.mxu0 %v195
  %1660 = vmatprep.subr.mxu0 %v200
  %1661 = vmatpush1.msra.mxu0 %v199
  %1662 = vmatprep.subr.mxu0 %v204
  %1663 = vmatpush1.msra.mxu0 %v203
  %1664 = vmatprep.subr.mxu0 %v208
  %1665 = vmatpush1.msra.mxu0 %v207
  %1666 = vmatprep.subr.mxu0 %v212
  %1667 = vmatpush1.msra.mxu0 %v211
  %1668 = vmatprep.subr.mxu0 %v216
  %1669 = vmatpush1.msra.mxu0 %v215
  %1670 = vmatprep.subr.mxu0 %v220
  %1671 = vmatpush1.msra.mxu0 %v219
  %1672 = vmatprep.subr.mxu0 %v224
  %1673 = vmatpush1.msra.mxu0 %v223
  %1674 = vmatprep.subr.mxu0 %v228
  %1675 = vmatpush1.msra.mxu0 %v227
  %1676 = vmatprep.subr.mxu0 %v232
  %1677 = vmatpush1.msra.mxu0 %v231
  %1678 = vmatprep.subr.mxu0 %v236
  %1679 = vmatpush1.msra.mxu0 %v235
  %1680 = vmatprep.subr.mxu0 %v240
  %1681 = vmatpush1.msra.mxu0 %v239
  %1682 = vmatprep.subr.mxu0 %v244
  %1683 = vmatpush1.msra.mxu0 %v243
  %1684 = vmatprep.subr.mxu0 %v248
  %1685 = vmatpush1.msra.mxu0 %v247
  %1686 = vmatprep.subr.mxu0 %v252
  %1687 = vmatpush1.msra.mxu0 %v251
  %1688 = vmatprep.subr.mxu0 0.0
  %1689 = vmatpush1.msra.mxu0 0.0
  %1690 = vmatprep.subr.mxu0 0.0
  %1691 = vmatpush1.msra.mxu0 0.0
  %1692 = vmatprep.subr.mxu0 0.0
  %1693 = vmatpush1.msra.mxu0 0.0
  %1694 = vmatprep.subr.mxu0 0.0
  %1695 = vmatpush1.msra.mxu0 0.0
  %1696 = vmatprep.subr.mxu0 0.0
  %1697 = vmatpush1.msra.mxu0 0.0
  %1698 = vmatprep.subr.mxu0 0.0
  %1699 = vmatpush1.msra.mxu0 0.0
  %1700 = vmatprep.subr.mxu0 0.0
  %1701 = vmatpush1.msra.mxu0 0.0
  %1702 = vmatprep.subr.mxu0 0.0
  %1703 = vmatpush1.msra.mxu0 0.0
  %1704 = vmatprep.subr.mxu0 0.0
  %1705 = vmatpush1.msra.mxu0 0.0
  %1706 = vmatprep.subr.mxu0 0.0
  %1707 = vmatpush1.msra.mxu0 0.0
  %1708 = vmatprep.subr.mxu0 0.0
  %1709 = vmatpush1.msra.mxu0 0.0
  %1710 = vmatprep.subr.mxu0 0.0
  %1711 = vmatpush1.msra.mxu0 0.0
  %1712 = vmatprep.subr.mxu0 0.0
  %1713 = vmatpush1.msra.mxu0 0.0
  %1714 = vmatprep.subr.mxu0 0.0
  %1715 = vmatpush1.msra.mxu0 0.0
  %1716 = vmatprep.subr.mxu0 0.0
  %1717 = vmatpush1.msra.mxu0 0.0
  %1718 = vmatprep.subr.mxu0 0.0
  %1719 = vmatpush1.msra.mxu0 0.0
  %1720 = vmatprep.mubr.f32.mxu0 0.0
  %1721 = vmatmul.mubr.f32.gmra.mrb[0].mxu0 %v1568
  %v1722 = vpop.f32.mrb[0].mxu0
  %v1723 = vadd.f32 0.0, %v1722
  %v1724 = vpop.f32.mrb[0].mxu0
  %v1725 = vadd.f32 0.0, %v1724
  %1726 = vmatprep.mubr.f32.mxu0 0.0
  %1727 = vmatmul.mubr.f32.gmra.mrb[0].mxu0 %v1569
  %v1728 = vpop.f32.mrb[0].mxu0
  %v1729 = vadd.f32 0.0, %v1728
  %v1730 = vpop.f32.mrb[0].mxu0
  %v1731 = vadd.f32 0.0, %v1730
  %1732 = vdwg.mxu0
  %v1733 = vadd.f32 %v1571, %v1646
  %v1734 = vadd.f32 %v1572, %v1648
  %v1735 = vadd.f32 %v1573, %v1723
  %v1736 = vadd.f32 %v1574, %v1725
  %v1737 = vadd.f32 %v1575, %v1652
  %v1738 = vadd.f32 %v1576, %v1654
  %v1739 = vadd.f32 %v1577, %v1729
  %v1740 = vadd.f32 %v1578, %v1731
  %v1741 = vxor.u32 %v1733, 2147483648
  %v1742 = vxor.u32 %v1737, 2147483648
  %v1743 = vmul.f32 %v1741, 1.442695
  %v1744 = vpow.pop %v1743
  %v1745 = vmul.f32 %v1742, 1.442695
  %v1746 = vpow.pop %v1745
  %v1747 = vadd.f32 %v1744, 1.0
  %v1748 = vadd.f32 %v1746, 1.0
  %v1749 = vrcp.pop %v1747
  %v1750 = vmul.f32 1.0, %v1749
  %v1751 = vrcp.pop %v1748
  %v1752 = vmul.f32 1.0, %v1751
  %v1753 = vxor.u32 %v1734, 2147483648
  %v1754 = vxor.u32 %v1738, 2147483648
  %v1755 = vmul.f32 %v1753, 1.442695
  %v1756 = vpow.pop %v1755
  %v1757 = vmul.f32 %v1754, 1.442695
  %v1758 = vpow.pop %v1757
  %v1759 = vadd.f32 %v1756, 1.0
  %v1760 = vadd.f32 %v1758, 1.0
  %v1761 = vrcp.pop %v1759
  %v1762 = vmul.f32 1.0, %v1761
  %v1763 = vrcp.pop %v1760
  %v1764 = vmul.f32 1.0, %v1763
  %v1765 = vtanh.pop %v1735
  %v1766 = vtanh.pop %v1739
  %v1767 = vxor.u32 %v1736, 2147483648
  %v1768 = vxor.u32 %v1740, 2147483648
  %v1769 = vmul.f32 %v1767, 1.442695
  %v1770 = vpow.pop %v1769
  %v1771 = vmul.f32 %v1768, 1.442695
  %v1772 = vpow.pop %v1771
  %v1773 = vadd.f32 %v1770, 1.0
  %v1774 = vadd.f32 %v1772, 1.0
  %v1775 = vrcp.pop %v1773
  %v1776 = vmul.f32 1.0, %v1775
  %v1777 = vrcp.pop %v1774
  %v1778 = vmul.f32 1.0, %v1777
  %v1779 = vmul.f32 %v1762, %v1564
  %v1780 = vmul.f32 %v1764, %v1565
  %v1781 = vmul.f32 %v1750, %v1765
  %v1782 = vmul.f32 %v1752, %v1766
  %v1783 = vadd.f32 %v1779, %v1781
  %v1784 = vadd.f32 %v1780, %v1782
  %v1785 = vtanh.pop %v1783
  %v1786 = vtanh.pop %v1784
  %v1787 = vmul.f32 %v1776, %v1785
  %v1788 = vmul.f32 %v1778, %v1786
  %s1789 = scalar_lea.vmem %s0, 448
  %v1790 = vld [vmem:[%s1789] sm:$0xff]
  %v1791 = vld [vmem:[%s1789 + $0x8] sm:$0xff]
  %v1792 = vld [vmem:[%s1789 + $0x10] sm:$0xff]
  %v1793 = vld [vmem:[%s1789 + $0x18] sm:$0xff]
  %v1794 = vld [vmem:[%s1789 + $0x20] sm:$0xff]
  %v1795 = vld [vmem:[%s1789 + $0x28] sm:$0xff]
  %v1796 = vld [vmem:[%s1789 + $0x30] sm:$0xff]
  %v1797 = vld [vmem:[%s1789 + $0x38] sm:$0xff]
  %1798 = vmatprep.subr.mxu0 %v190
  %1799 = vmatpush1.msra.mxu0 %v189
  %1800 = vmatprep.subr.mxu0 %v194
  %1801 = vmatpush1.msra.mxu0 %v193
  %1802 = vmatprep.subr.mxu0 %v198
  %1803 = vmatpush1.msra.mxu0 %v197
  %1804 = vmatprep.subr.mxu0 %v202
  %1805 = vmatpush1.msra.mxu0 %v201
  %1806 = vmatprep.subr.mxu0 %v206
  %1807 = vmatpush1.msra.mxu0 %v205
  %1808 = vmatprep.subr.mxu0 %v210
  %1809 = vmatpush1.msra.mxu0 %v209
  %1810 = vmatprep.subr.mxu0 %v214
  %1811 = vmatpush1.msra.mxu0 %v213
  %1812 = vmatprep.subr.mxu0 %v218
  %1813 = vmatpush1.msra.mxu0 %v217
  %1814 = vmatprep.subr.mxu0 %v222
  %1815 = vmatpush1.msra.mxu0 %v221
  %1816 = vmatprep.subr.mxu0 %v226
  %1817 = vmatpush1.msra.mxu0 %v225
  %1818 = vmatprep.subr.mxu0 %v230
  %1819 = vmatpush1.msra.mxu0 %v229
  %1820 = vmatprep.subr.mxu0 %v234
  %1821 = vmatpush1.msra.mxu0 %v233
  %1822 = vmatprep.subr.mxu0 %v238
  %1823 = vmatpush1.msra.mxu0 %v237
  %1824 = vmatprep.subr.mxu0 %v242
  %1825 = vmatpush1.msra.mxu0 %v241
  %1826 = vmatprep.subr.mxu0 %v246
  %1827 = vmatpush1.msra.mxu0 %v245
  %1828 = vmatprep.subr.mxu0 %v250
  %1829 = vmatpush1.msra.mxu0 %v249
  %1830 = vmatprep.subr.mxu0 0.0
  %1831 = vmatpush1.msra.mxu0 0.0
  %1832 = vmatprep.subr.mxu0 0.0
  %1833 = vmatpush1.msra.mxu0 0.0
  %1834 = vmatprep.subr.mxu0 0.0
  %1835 = vmatpush1.msra.mxu0 0.0
  %1836 = vmatprep.subr.mxu0 0.0
  %1837 = vmatpush1.msra.mxu0 0.0
  %1838 = vmatprep.subr.mxu0 0.0
  %1839 = vmatpush1.msra.mxu0 0.0
  %1840 = vmatprep.subr.mxu0 0.0
  %1841 = vmatpush1.msra.mxu0 0.0
  %1842 = vmatprep.subr.mxu0 0.0
  %1843 = vmatpush1.msra.mxu0 0.0
  %1844 = vmatprep.subr.mxu0 0.0
  %1845 = vmatpush1.msra.mxu0 0.0
  %1846 = vmatprep.subr.mxu0 0.0
  %1847 = vmatpush1.msra.mxu0 0.0
  %1848 = vmatprep.subr.mxu0 0.0
  %1849 = vmatpush1.msra.mxu0 0.0
  %1850 = vmatprep.subr.mxu0 0.0
  %1851 = vmatpush1.msra.mxu0 0.0
  %1852 = vmatprep.subr.mxu0 0.0
  %1853 = vmatpush1.msra.mxu0 0.0
  %1854 = vmatprep.subr.mxu0 0.0
  %1855 = vmatpush1.msra.mxu0 0.0
  %1856 = vmatprep.subr.mxu0 0.0
  %1857 = vmatpush1.msra.mxu0 0.0
  %1858 = vmatprep.subr.mxu0 0.0
  %1859 = vmatpush1.msra.mxu0 0.0
  %1860 = vmatprep.subr.mxu0 0.0
  %1861 = vmatpush1.msra.mxu0 0.0
  %1862 = vmatprep.mubr.f32.mxu0 0.0
  %1863 = vmatmul.mubr.f32.gmra.mrb[0].mxu0 %v1787
  %v1864 = vpop.f32.mrb[0].mxu0
  %v1865 = vadd.f32 0.0, %v1864
  %v1866 = vpop.f32.mrb[0].mxu0
  %v1867 = vadd.f32 0.0, %v1866
  %1868 = vmatprep.mubr.f32.mxu0 0.0
  %1869 = vmatmul.mubr.f32.gmra.mrb[0].mxu0 %v1788
  %v1870 = vpop.f32.mrb[0].mxu0
  %v1871 = vadd.f32 0.0, %v1870
  %v1872 = vpop.f32.mrb[0].mxu0
  %v1873 = vadd.f32 0.0, %v1872
  %1874 = vdwg.mxu0
  %1875 = vmatprep.subr.mxu0 %v192
  %1876 = vmatpush1.msra.mxu0 %v191
  %1877 = vmatprep.subr.mxu0 %v196
  %1878 = vmatpush1.msra.mxu0 %v195
  %1879 = vmatprep.subr.mxu0 %v200
  %1880 = vmatpush1.msra.mxu0 %v199
  %1881 = vmatprep.subr.mxu0 %v204
  %1882 = vmatpush1.msra.mxu0 %v203
  %1883 = vmatprep.subr.mxu0 %v208
  %1884 = vmatpush1.msra.mxu0 %v207
  %1885 = vmatprep.subr.mxu0 %v212
  %1886 = vmatpush1.msra.mxu0 %v211
  %1887 = vmatprep.subr.mxu0 %v216
  %1888 = vmatpush1.msra.mxu0 %v215
  %1889 = vmatprep.subr.mxu0 %v220
  %1890 = vmatpush1.msra.mxu0 %v219
  %1891 = vmatprep.subr.mxu0 %v224
  %1892 = vmatpush1.msra.mxu0 %v223
  %1893 = vmatprep.subr.mxu0 %v228
  %1894 = vmatpush1.msra.mxu0 %v227
  %1895 = vmatprep.subr.mxu0 %v232
  %1896 = vmatpush1.msra.mxu0 %v231
  %1897 = vmatprep.subr.mxu0 %v236
  %1898 = vmatpush1.msra.mxu0 %v235
  %1899 = vmatprep.subr.mxu0 %v240
  %1900 = vmatpush1.msra.mxu0 %v239
  %1901 = vmatprep.subr.mxu0 %v244
  %1902 = vmatpush1.msra.mxu0 %v243
  %1903 = vmatprep.subr.mxu0 %v248
  %1904 = vmatpush1.msra.mxu0 %v247
  %1905 = vmatprep.subr.mxu0 %v252
  %1906 = vmatpush1.msra.mxu0 %v251
  %1907 = vmatprep.subr.mxu0 0.0
  %1908 = vmatpush1.msra.mxu0 0.0
  %1909 = vmatprep.subr.mxu0 0.0
  %1910 = vmatpush1.msra.mxu0 0.0
  %1911 = vmatprep.subr.mxu0 0.0
  %1912 = vmatpush1.msra.mxu0 0.0
  %1913 = vmatprep.subr.mxu0 0.0
  %1914 = vmatpush1.msra.mxu0 0.0
  %1915 = vmatprep.subr.mxu0 0.0
  %1916 = vmatpush1.msra.mxu0 0.0
  %1917 = vmatprep.subr.mxu0 0.0
  %1918 = vmatpush1.msra.mxu0 0.0
  %1919 = vmatprep.subr.mxu0 0.0
  %1920 = vmatpush1.msra.mxu0 0.0
  %1921 = vmatprep.subr.mxu0 0.0
  %1922 = vmatpush1.msra.mxu0 0.0
  %1923 = vmatprep.subr.mxu0 0.0
  %1924 = vmatpush1.msra.mxu0 0.0
  %1925 = vmatprep.subr.mxu0 0.0
  %1926 = vmatpush1.msra.mxu0 0.0
  %1927 = vmatprep.subr.mxu0 0.0
  %1928 = vmatpush1.msra.mxu0 0.0
  %1929 = vmatprep.subr.mxu0 0.0
  %1930 = vmatpush1.msra.mxu0 0.0
  %1931 = vmatprep.subr.mxu0 0.0
  %1932 = vmatpush1.msra.mxu0 0.0
  %1933 = vmatprep.subr.mxu0 0.0
  %1934 = vmatpush1.msra.mxu0 0.0
  %1935 = vmatprep.subr.mxu0 0.0
  %1936 = vmatpush1.msra.mxu0 0.0
  %1937 = vmatprep.subr.mxu0 0.0
  %1938 = vmatpush1.msra.mxu0 0.0
  %1939 = vmatprep.mubr.f32.mxu0 0.0
  %1940 = vmatmul.mubr.f32.gmra.mrb[0].mxu0 %v1787
  %v1941 = vpop.f32.mrb[0].mxu0
  %v1942 = vadd.f32 0.0, %v1941
  %v1943 = vpop.f32.mrb[0].mxu0
  %v1944 = vadd.f32 0.0, %v1943
  %1945 = vmatprep.mubr.f32.mxu0 0.0
  %1946 = vmatmul.mubr.f32.gmra.mrb[0].mxu0 %v1788
  %v1947 = vpop.f32.mrb[0].mxu0
  %v1948 = vadd.f32 0.0, %v1947
  %v1949 = vpop.f32.mrb[0].mxu0
  %v1950 = vadd.f32 0.0, %v1949
  %1951 = vdwg.mxu0
  %v1952 = vadd.f32 %v1790, %v1865
  %v1953 = vadd.f32 %v1791, %v1867
  %v1954 = vadd.f32 %v1792, %v1942
  %v1955 = vadd.f32 %v1793, %v1944
  %v1956 = vadd.f32 %v1794, %v1871
  %v1957 = vadd.f32 %v1795, %v1873
  %v1958 = vadd.f32 %v1796, %v1948
  %v1959 = vadd.f32 %v1797, %v1950
  %v1960 = vxor.u32 %v1952, 2147483648
  %v1961 = vxor.u32 %v1956, 2147483648
  %v1962 = vmul.f32 %v1960, 1.442695
  %v1963 = vpow.pop %v1962
  %v1964 = vmul.f32 %v1961, 1.442695
  %v1965 = vpow.pop %v1964
  %v1966 = vadd.f32 %v1963, 1.0
  %v1967 = vadd.f32 %v1965, 1.0
  %v1968 = vrcp.pop %v1966
  %v1969 = vmul.f32 1.0, %v1968
  %v1970 = vrcp.pop %v1967
  %v1971 = vmul.f32 1.0, %v1970
  %v1972 = vxor.u32 %v1953, 2147483648
  %v1973 = vxor.u32 %v1957, 2147483648
  %v1974 = vmul.f32 %v1972, 1.442695
  %v1975 = vpow.pop %v1974
  %v1976 = vmul.f32 %v1973, 1.442695
  %v1977 = vpow.pop %v1976
  %v1978 = vadd.f32 %v1975, 1.0
  %v1979 = vadd.f32 %v1977, 1.0
  %v1980 = vrcp.pop %v1978
  %v1981 = vmul.f32 1.0, %v1980
  %v1982 = vrcp.pop %v1979
  %v1983 = vmul.f32 1.0, %v1982
  %v1984 = vtanh.pop %v1954
  %v1985 = vtanh.pop %v1958
  %v1986 = vxor.u32 %v1955, 2147483648
  %v1987 = vxor.u32 %v1959, 2147483648
  %v1988 = vmul.f32 %v1986, 1.442695
  %v1989 = vpow.pop %v1988
  %v1990 = vmul.f32 %v1987, 1.442695
  %v1991 = vpow.pop %v1990
  %v1992 = vadd.f32 %v1989, 1.0
  %v1993 = vadd.f32 %v1991, 1.0
  %v1994 = vrcp.pop %v1992
  %v1995 = vmul.f32 1.0, %v1994
  %v1996 = vrcp.pop %v1993
  %v1997 = vmul.f32 1.0, %v1996
  %v1998 = vmul.f32 %v1981, %v1783
  %v1999 = vmul.f32 %v1983, %v1784
  %v2000 = vmul.f32 %v1969, %v1984
  %v2001 = vmul.f32 %v1971, %v1985
  %v2002 = vadd.f32 %v1998, %v2000
  %v2003 = vadd.f32 %v1999, %v2001
  %v2004 = vtanh.pop %v2002
  %v2005 = vtanh.pop %v2003
  %v2006 = vmul.f32 %v1995, %v2004
  %v2007 = vmul.f32 %v1997, %v2005
  %2008 = vst [vmem:[#allocation3] sm:$0xff] %v2006
  %2009 = vst [vmem:[#allocation3 + $0x8] sm:$0xff] %v2007
  %2010 = vst [vmem:[#allocation4] sm:$0xff] %v2002
  %2011 = vst [vmem:[#allocation4 + $0x8] sm:$0xff] %v2003
  // Predicated region
  $region45: #{lstm_forward.1} parent=0 // pred_check
    %p2012 = pneg %p9
  $region46: #{lstm_forward.1} parent=0 // pred_check_branch
    %2014 = sbr.rel (%p2012) target = $region48
  $region47: #{lstm_forward.1} parent=0 // pred_region
    %2015 = vst [vmem:[%s2] sm:$0xff] %v2006
    %2016 = vst [vmem:[%s2 + $0x8] sm:$0xff] %v2007
  $region48: #{lstm_forward.1} parent=0 // pred_fallthru
    _
  // Predicated region
  $region49: #{lstm_forward.1} parent=0 // pred_check
    _
  $region50: #{lstm_forward.1} parent=0 // pred_check_branch
    %2018 = sbr.rel (0) target = $region52
  $region51: #{lstm_forward.1} parent=0 // pred_region
    _
  $region52: #{lstm_forward.1} parent=0 // pred_fallthru
    _
  // Predicated region
  $region53: #{lstm_forward.1} parent=0 // pred_check
    _
  $region54: #{lstm_forward.1} parent=0 // pred_check_branch
    %2020 = sbr.rel (0) target = $region56
  $region55: #{lstm_forward.1} parent=0 // pred_region
    _
  $region56: #{lstm_forward.1} parent=0 // pred_fallthru
    _

</llo_original>
